<compile_context>
chip_gen: v5e
topology: v5e:2x2
jax: 0.10.0
libtpu: 0.0.40
codegen_flags: <defaults>
</compile_context>

<pallas_src>
import functools

import jax
import jax.numpy as jnp
from jax.experimental import pallas as pl
from jax.experimental.pallas import tpu as pltpu

NEG_SLOPE = 0.01          # nn.LeakyReLU default
BN_EPS = 1e-5             # nn.BatchNorm2d default
LANE = 128                # pad all output-channel dims to the TPU lane width

# Chip-aware VMEM budgets: v5e/v6e have 128 MiB VMEM -> large tiles amortize the
# ~0.35us/step pipeline overhead; v7x only has 64 MiB -> stay conservative.
try:
    _VMEM_CAP = pltpu.get_tpu_info().vmem_capacity_bytes
except Exception:  # unknown chip / query failure -> conservative (v7x-safe) defaults
    _VMEM_CAP = 64 * 1024 * 1024
if _VMEM_CAP >= 100 * 1024 * 1024:          # v5e / v6e (128 MiB physical)
    VMEM_LIMIT, TILE_BUDGET = 96 * 1024 * 1024, 48 * 1024 * 1024
else:                                        # v7x (64 MiB physical)
    VMEM_LIMIT, TILE_BUDGET = 40 * 1024 * 1024, 20 * 1024 * 1024


def _round_up(n, m=LANE):
    return ((n + m - 1) // m) * m


def _pick_tile_m(M, K, N):
    """Pick an M tile that (a) exactly divides M (never an unbounded fallback),
    (b) leaves >=2 grid steps when M >= 16 so v7x's two TensorCores both get work,
    (c) keeps the double-buffered working set under TILE_BUDGET."""
    def need(t):
        # 2x bf16 input tile + resident bf16 weights + 2x bf16 output + f32 accumulator
        return 2 * t * K * 2 + K * N * 2 + 2 * t * N * 2 + t * N * 4

    divs = [d for d in range(1, M + 1) if M % d == 0]
    aligned = [d for d in divs if d % 8 == 0] or divs
    cap = M // 2 if M >= 16 else M
    cands = [d for d in aligned if d <= cap] or aligned
    fit = [d for d in cands if need(d) <= TILE_BUDGET]
    return max(fit) if fit else min(cands)


# --------------------------------------------------------------------------- kernel
def _fused_layer_kernel(*refs, prologue, leaky_out, stats):
    """[BN-apply + LeakyReLU prologue] -> matmul + bias -> [LeakyReLU] -> [BN-stats accum]."""
    if prologue:
        x_ref, w_ref, b_ref, sc_ref, sh_ref = refs[:5]
        rest = refs[5:]
    else:
        x_ref, w_ref, b_ref = refs[:3]
        rest = refs[3:]
    if stats:
        o_ref, s_ref = rest
    else:
        (o_ref,) = rest

    if prologue:
        # Previous layer's BatchNorm apply (per-channel FMA) + LeakyReLU on the already
        # loaded input tile: removes the standalone BN-apply HBM round trip entirely.
        a = x_ref[...].astype(jnp.float32) * sc_ref[...] + sh_ref[...]
        a = jnp.maximum(a, NEG_SLOPE * a).astype(jnp.bfloat16)
    else:
        a = x_ref[...]

    y = jnp.dot(a, w_ref[...], preferred_element_type=jnp.float32) + b_ref[...]
    if leaky_out:
        y = jnp.maximum(y, NEG_SLOPE * y)
    o_ref[...] = y.astype(o_ref.dtype)

    if stats:
        # Accumulate per-channel sum / sum-of-squares in the resident (2, N) output block
        # across the (sequential) M grid: no per-tile partials in HBM, no external reduce.
        # Stats use the bf16-rounded values so BN normalizes exactly what the next kernel
        # reads back.
        yb = y.astype(o_ref.dtype).astype(jnp.float32)
        part = jnp.concatenate(
            [jnp.sum(yb, axis=0, keepdims=True),
             jnp.sum(yb * yb, axis=0, keepdims=True)], axis=0)

        @pl.when(pl.program_id(0) == 0)
        def _init():
            s_ref[...] = jnp.zeros_like(s_ref)

        s_ref[...] += part


# --------------------------------------------------------------------------- wrapper
def fused_layer(x, w, b, scale=None, shift=None, *, leaky_out=False, stats=False,
                out_dtype=jnp.bfloat16):
    """One fused layer: optional affine+LeakyReLU prologue, x@w+b, optional LeakyReLU,
    optional in-kernel BatchNorm statistics accumulation."""
    M, K = x.shape
    Kw, N = w.shape
    assert K == Kw and N % LANE == 0
    prologue = scale is not None
    tm = _pick_tile_m(M, K, N)
    nt = M // tm

    in_specs = [pl.BlockSpec((tm, K), lambda i: (i, 0)),
                pl.BlockSpec((K, N), lambda i: (0, 0)),
                pl.BlockSpec((1, N), lambda i: (0, 0))]
    args = [x, w, b]
    if prologue:
        in_specs += [pl.BlockSpec((1, K), lambda i: (0, 0)),
                     pl.BlockSpec((1, K), lambda i: (0, 0))]
        args += [scale.reshape(1, K).astype(jnp.float32),
                 shift.reshape(1, K).astype(jnp.float32)]

    if stats:
        out_shape = (jax.ShapeDtypeStruct((M, N), out_dtype),
                     jax.ShapeDtypeStruct((2, N), jnp.float32))
        out_specs = (pl.BlockSpec((tm, N), lambda i: (i, 0)),
                     pl.BlockSpec((2, N), lambda i: (0, 0)))
        # Stats accumulate across M tiles -> this grid axis must run sequentially.
        sem = ("arbitrary",)
    else:
        out_shape = jax.ShapeDtypeStruct((M, N), out_dtype)
        out_specs = pl.BlockSpec((tm, N), lambda i: (i, 0))
        sem = ("parallel",)          # megacore-splittable on v7x

    kernel = functools.partial(_fused_layer_kernel, prologue=prologue,
                               leaky_out=leaky_out, stats=stats)
    return pl.pallas_call(
        kernel,
        out_shape=out_shape,
        grid=(nt,),
        in_specs=in_specs,
        out_specs=out_specs,
        compiler_params=pltpu.CompilerParams(dimension_semantics=sem,
                                             vmem_limit_bytes=VMEM_LIMIT),
    )(*args)


# --------------------------------------------------------------------------- glue
def bn_finalize(stats, gamma, beta, count, c_real):
    """Turn accumulated (sum, sum_sq) into the per-channel FMA (scale, shift) plus the
    raw-activation pad value p with affine(p) == 0, so spatial zero-padding of the
    *normalized* activation is reproduced exactly by the fused prologue."""
    ssum = stats[0, :c_real]
    ssq = stats[1, :c_real]
    count = float(count)
    mean = ssum / count
    var = jnp.maximum(ssq / count - mean * mean, 0.0)   # biased variance (torch's norm path)
    inv = jax.lax.rsqrt(var + BN_EPS)
    scale = gamma * inv
    shift = beta - mean * scale
    safe = jnp.where(scale != 0.0, scale, 1.0)
    padval = jnp.where(scale != 0.0, -shift / safe, 0.0)
    return scale, shift, padval


def im2col(x_nhwc, pad_value=None):
    """3x3 / stride-2 / pad-1 patches in bf16; feature order = (kh, kw, cin).
    `pad_value` (per channel) pads the *raw* conv output so the next kernel's fused
    BN-apply + LeakyReLU maps the halo exactly to 0 (matching torch's zero-padding)."""
    # TODO(synk): this still materializes a ~2.25x patch matrix in HBM; an implicit-GEMM
    # conv (in-kernel 3x3 tap gather / strided DMA) would remove that traffic.
    N, H, W, C = x_nhwc.shape
    if pad_value is None:
        xp = jnp.pad(x_nhwc, ((0, 0), (1, 1), (1, 1), (0, 0)))
    else:
        pv = jnp.broadcast_to(pad_value.astype(x_nhwc.dtype).reshape(1, 1, 1, C),
                              (N, H + 2, W + 2, C))
        xp = jax.lax.dynamic_update_slice(pv, x_nhwc, (0, 1, 1, 0))
    Ho = (H + 2 - 3) // 2 + 1
    Wo = (W + 2 - 3) // 2 + 1
    cols = [xp[:, kh:kh + 2 * Ho:2, kw:kw + 2 * Wo:2, :]
            for kh in range(3) for kw in range(3)]
    patches = jnp.concatenate(cols, axis=-1)                      # (N,Ho,Wo,9*C)
    return patches.reshape(N * Ho * Wo, 9 * C).astype(jnp.bfloat16), (N, Ho, Wo)


def conv_w_to_mat(w_oihw):
    """(Cout,Cin,3,3) torch layout -> (9*Cin, Cout) matching im2col feature order."""
    cout, cin, kh, kw = w_oihw.shape
    return jnp.transpose(w_oihw, (2, 3, 1, 0)).reshape(kh * kw * cin, cout)


def init_params(key, dim, data_shape):
    cin, H, W = data_shape
    ks = jax.random.split(key, 8)

    def conv_w(k, cout, cin_):
        return jax.random.normal(k, (cout, cin_, 3, 3), jnp.float32) / jnp.sqrt(9.0 * cin_)

    c1, c2, c3 = dim, 2 * dim, 4 * dim
    n1, n2, n3 = _round_up(c1), _round_up(c2), _round_up(c3)
    H3, W3 = H // 8, W // 8
    init_dim = dim * H * W // 16                     # == c3 * H3 * W3

    def pad_cols(m, n):
        return jnp.pad(m, ((0, 0), (0, n - m.shape[1])))

    def pad_row(v, n):
        v = v.reshape(1, -1)
        return jnp.pad(v, ((0, 0), (0, n - v.shape[1])))

    w1 = conv_w(ks[0], c1, cin)
    w2 = conv_w(ks[2], c2, c1)
    w3 = conv_w(ks[4], c3, c2)
    wl = jax.random.normal(ks[6], (init_dim, 1), jnp.float32) / jnp.sqrt(init_dim)

    # Permute the Linear weight rows from torch's NCHW-flatten order to NHWC-flatten
    # order, so the runtime flatten of the conv3 activation needs no transpose.
    perm = (jnp.arange(c3)[None, None, :] * (H3 * W3)
            + jnp.arange(H3)[:, None, None] * W3
            + jnp.arange(W3)[None, :, None]).reshape(-1)
    wl_nhwc = wl[perm]

    return {
        # bf16 weights (MXU-native), f32 biases, output channels lane-padded to 128.
        "w1m": pad_cols(conv_w_to_mat(w1), n1).astype(jnp.bfloat16),
        "b1": pad_row(0.01 * jax.random.normal(ks[1], (c1,), jnp.float32), n1),
        "w2m": pad_cols(conv_w_to_mat(w2), n2).astype(jnp.bfloat16),
        "b2": pad_row(0.01 * jax.random.normal(ks[3], (c2,), jnp.float32), n2),
        "w3m": pad_cols(conv_w_to_mat(w3), n3).astype(jnp.bfloat16),
        "b3": pad_row(0.01 * jax.random.normal(ks[5], (c3,), jnp.float32), n3),
        # BatchNorm affine params (torch defaults gamma=1, beta=0), kept unpadded: they
        # are only ever tiled over the *next* layer's real-channel K dimension.
        "g2": jnp.ones((c2,), jnp.float32),
        "be2": jnp.zeros((c2,), jnp.float32),
        "g3": jnp.ones((c3,), jnp.float32),
        "be3": jnp.zeros((c3,), jnp.float32),
        # Linear(init_dim, 1): NHWC-permuted rows, output lane-padded to 128.
        "wlm": pad_cols(wl_nhwc, LANE).astype(jnp.bfloat16),
        "bl": pad_row(0.01 * jax.random.normal(ks[7], (1,), jnp.float32), LANE),
    }


def discriminator_forward(x_nchw, params, dim):
    x = jnp.transpose(x_nchw, (0, 2, 3, 1))                       # NCHW -> NHWC (input only)

    # conv1 (3x3, s2, p1) + LeakyReLU fused in the matmul epilogue.
    p1, (N, H1, W1) = im2col(x)
    y1 = fused_layer(p1, params["w1m"], params["b1"], leaky_out=True)
    x1 = y1[:, :dim].reshape(N, H1, W1, dim)

    # conv2: matmul + fused BatchNorm2d batch statistics (no standalone BN-apply pass).
    p2, (_, H2, W2) = im2col(x1)
    y2, st2 = fused_layer(p2, params["w2m"], params["b2"], stats=True)
    sc2, sh2, pv2 = bn_finalize(st2, params["g2"], params["be2"], p2.shape[0], 2 * dim)
    x2raw = y2[:, :2 * dim].reshape(N, H2, W2, 2 * dim)           # raw (pre-BN) conv2 output

    # conv3: BN2-apply + LeakyReLU fused into its prologue (halo patches carry the
    # per-channel pad value the affine maps to exactly 0), plus fused BN3 statistics.
    p3, (_, H3, W3) = im2col(x2raw, pad_value=pv2)
    y3, st3 = fused_layer(p3, params["w3m"], params["b3"],
                          jnp.tile(sc2, 9), jnp.tile(sh2, 9), stats=True)
    sc3, sh3, _ = bn_finalize(st3, params["g3"], params["be3"], p3.shape[0], 4 * dim)
    x3raw = y3[:, :4 * dim].reshape(N, H3, W3, 4 * dim)

    # Linear(init_dim, 1): BN3-apply + LeakyReLU fused into its prologue; the NHWC flatten
    # is free because the Linear weight rows were permuted at init time.
    flat = x3raw.reshape(N, H3 * W3 * 4 * dim)
    out = fused_layer(flat, params["wlm"], params["bl"],
                      jnp.tile(sc3, H3 * W3), jnp.tile(sh3, H3 * W3),
                      out_dtype=jnp.float32)
    return out[:, :1]                                             # (N, 1) f32


if __name__ == "__main__":
    dim = 16                       # small "dim"
    data_shape = (3, 16, 16)       # small "data_shape"; init_dim = 16*16*16//16 = 256
    key = jax.random.PRNGKey(0)
    kx, kp = jax.random.split(key)

    x = jax.random.normal(kx, (2, *data_shape), jnp.float32)      # NCHW, batch=2
    params = init_params(kp, dim, data_shape)

    fwd = jax.jit(discriminator_forward, static_argnums=2)
    out = jax.block_until_ready(fwd(x, params, dim))
    assert out.shape == (2, 1) and out.dtype == jnp.float32
    print("KERNEL_OK")
</pallas_src>

<mosaic_0001>
module attributes {stable_mosaic.version = 11 : i64} {
  func.func @_fused_layer_kernel(%arg0: i32, %arg1: memref<64x27xbf16, #tpu.memory_space<vmem>>, %arg2: memref<27x128xbf16, #tpu.memory_space<vmem>>, %arg3: memref<1x128xf32, #tpu.memory_space<vmem>>, %arg4: memref<64x128xbf16, #tpu.memory_space<vmem>>) attributes {dimension_semantics = [#tpu.dimension_semantics<parallel>], iteration_bounds = array<i64: 2>, scalar_prefetch = 0 : i64, scratch_operands = 0 : i64, tpu.core_type = #tpu.core_type<tc>, window_params = [{transform_indices = @transform_0, window_bounds = array<i64: 64, 27>}, {pipeline_mode = #tpu.pipeline_mode<synchronous>, transform_indices = @transform_1, window_bounds = array<i64: 27, 128>}, {pipeline_mode = #tpu.pipeline_mode<synchronous>, transform_indices = @transform_2, window_bounds = array<i64: 1, 128>}, {transform_indices = @transform_3, window_bounds = array<i64: 64, 128>}]} {
    %c0 = arith.constant 0 : index
    %c0_0 = arith.constant 0 : index
    %0 = vector.load %arg1[%c0, %c0_0] : memref<64x27xbf16, #tpu.memory_space<vmem>>, vector<64x27xbf16>
    %c0_1 = arith.constant 0 : index
    %c0_2 = arith.constant 0 : index
    %1 = vector.load %arg2[%c0_1, %c0_2] : memref<27x128xbf16, #tpu.memory_space<vmem>>, vector<27x128xbf16>
    %cst = arith.constant dense<0.000000e+00> : vector<64x128xf32>
    %2 = tpu.matmul %0, %1, %cst {dimension_numbers = #tpu.dot_dimension_numbers<[1], [0], [0], [1], [0, 0, 1, 1], [], []>} : vector<64x27xbf16>, vector<27x128xbf16>, vector<64x128xf32> -> vector<64x128xf32>
    %c0_3 = arith.constant 0 : index
    %c0_4 = arith.constant 0 : index
    %3 = vector.load %arg3[%c0_3, %c0_4] : memref<1x128xf32, #tpu.memory_space<vmem>>, vector<1x128xf32>
    %4 = vector.broadcast %3 : vector<1x128xf32> to vector<64x128xf32>
    %5 = arith.addf %2, %4 : vector<64x128xf32>
    %cst_5 = arith.constant 0.00999999977 : f32
    %6 = vector.broadcast %cst_5 : f32 to vector<64x128xf32>
    %7 = arith.mulf %6, %5 : vector<64x128xf32>
    %8 = arith.maximumf %5, %7 : vector<64x128xf32>
    %9 = arith.truncf %8 : vector<64x128xf32> to vector<64x128xbf16>
    %c0_6 = arith.constant 0 : index
    %c0_7 = arith.constant 0 : index
    %10 = vector.load %arg4[%c0_6, %c0_7] : memref<64x128xbf16, #tpu.memory_space<vmem>>, vector<64x128xbf16>
    tpu.vector_store %arg4[%c0_6, %c0_7], %9 {strides = array<i32>} : memref<64x128xbf16, #tpu.memory_space<vmem>>, vector<64x128xbf16>,
    return
  }
  func.func @transform_0(%arg0: i32) -> (i32, i32) {
    %c0_i32 = arith.constant 0 : i32
    %c0_i32_0 = arith.constant 0 : i32
    return %arg0, %c0_i32 : i32, i32
  }
  func.func @transform_1(%arg0: i32) -> (i32, i32) {
    %c0_i32 = arith.constant 0 : i32
    %c0_i32_0 = arith.constant 0 : i32
    %c0_i32_1 = arith.constant 0 : i32
    return %c0_i32, %c0_i32_0 : i32, i32
  }
  func.func @transform_2(%arg0: i32) -> (i32, i32) {
    %c0_i32 = arith.constant 0 : i32
    %c0_i32_0 = arith.constant 0 : i32
    %c0_i32_1 = arith.constant 0 : i32
    return %c0_i32, %c0_i32_0 : i32, i32
  }
  func.func @transform_3(%arg0: i32) -> (i32, i32) {
    %c0_i32 = arith.constant 0 : i32
    %c0_i32_0 = arith.constant 0 : i32
    return %arg0, %c0_i32 : i32, i32
  }
}

module attributes {stable_mosaic.version = 11 : i64} {
  func.func @_fused_layer_kernel(%arg0: i32, %arg1: memref<16x144xbf16, #tpu.memory_space<vmem>>, %arg2: memref<144x128xbf16, #tpu.memory_space<vmem>>, %arg3: memref<1x128xf32, #tpu.memory_space<vmem>>, %arg4: memref<16x128xbf16, #tpu.memory_space<vmem>>, %arg5: memref<2x128xf32, #tpu.memory_space<vmem>>) attributes {dimension_semantics = [#tpu.dimension_semantics<arbitrary>], iteration_bounds = array<i64: 2>, scalar_prefetch = 0 : i64, scratch_operands = 0 : i64, tpu.core_type = #tpu.core_type<tc>, window_params = [{transform_indices = @transform_0, window_bounds = array<i64: 16, 144>}, {pipeline_mode = #tpu.pipeline_mode<synchronous>, transform_indices = @transform_1, window_bounds = array<i64: 144, 128>}, {pipeline_mode = #tpu.pipeline_mode<synchronous>, transform_indices = @transform_2, window_bounds = array<i64: 1, 128>}, {transform_indices = @transform_3, window_bounds = array<i64: 16, 128>}, {pipeline_mode = #tpu.pipeline_mode<synchronous>, transform_indices = @transform_4, window_bounds = array<i64: 2, 128>}]} {
    %c0 = arith.constant 0 : index
    %c0_0 = arith.constant 0 : index
    %0 = vector.load %arg1[%c0, %c0_0] : memref<16x144xbf16, #tpu.memory_space<vmem>>, vector<16x144xbf16>
    %c0_1 = arith.constant 0 : index
    %c0_2 = arith.constant 0 : index
    %1 = vector.load %arg2[%c0_1, %c0_2] : memref<144x128xbf16, #tpu.memory_space<vmem>>, vector<144x128xbf16>
    %cst = arith.constant dense<0.000000e+00> : vector<16x128xf32>
    %2 = tpu.matmul %0, %1, %cst {dimension_numbers = #tpu.dot_dimension_numbers<[1], [0], [0], [1], [0, 0, 1, 1], [], []>} : vector<16x144xbf16>, vector<144x128xbf16>, vector<16x128xf32> -> vector<16x128xf32>
    %c0_3 = arith.constant 0 : index
    %c0_4 = arith.constant 0 : index
    %3 = vector.load %arg3[%c0_3, %c0_4] : memref<1x128xf32, #tpu.memory_space<vmem>>, vector<1x128xf32>
    %4 = vector.broadcast %3 : vector<1x128xf32> to vector<16x128xf32>
    %5 = arith.addf %2, %4 : vector<16x128xf32>
    %6 = arith.truncf %5 : vector<16x128xf32> to vector<16x128xbf16>
    %c0_5 = arith.constant 0 : index
    %c0_6 = arith.constant 0 : index
    %7 = vector.load %arg4[%c0_5, %c0_6] : memref<16x128xbf16, #tpu.memory_space<vmem>>, vector<16x128xbf16>
    tpu.vector_store %arg4[%c0_5, %c0_6], %6 {strides = array<i32>} : memref<16x128xbf16, #tpu.memory_space<vmem>>, vector<16x128xbf16>,
    %8 = arith.truncf %5 : vector<16x128xf32> to vector<16x128xbf16>
    %9 = arith.extf %8 : vector<16x128xbf16> to vector<16x128xf32>
    %cst_7 = arith.constant dense<0.000000e+00> : vector<128xf32>
    %10 = vector.multi_reduction <add>, %9, %cst_7 [0] : vector<16x128xf32> to vector<128xf32>
    %11 = vector.shape_cast %10 : vector<128xf32> to vector<1x128xf32>
    %12 = arith.mulf %9, %9 : vector<16x128xf32>
    %cst_8 = arith.constant dense<0.000000e+00> : vector<128xf32>
    %13 = vector.multi_reduction <add>, %12, %cst_8 [0] : vector<16x128xf32> to vector<128xf32>
    %14 = vector.shape_cast %13 : vector<128xf32> to vector<1x128xf32>
    %15 = tpu.concatenate %11, %14 in 0 : vector<1x128xf32>, vector<1x128xf32> -> vector<2x128xf32>
    %c0_i32 = arith.constant 0 : i32
    %16 = arith.cmpi eq, %arg0, %c0_i32 : i32
    %17 = arith.extui %16 : i1 to i32
    %c0_i32_9 = arith.constant 0 : i32
    %18 = arith.cmpi ne, %17, %c0_i32_9 : i32
    scf.if %18 {
      %cst_14 = arith.constant 0.000000e+00 : f32
      %22 = vector.broadcast %cst_14 : f32 to vector<2x128xf32>
      %c0_15 = arith.constant 0 : index
      %c0_16 = arith.constant 0 : index
      %23 = vector.load %arg5[%c0_15, %c0_16] : memref<2x128xf32, #tpu.memory_space<vmem>>, vector<2x128xf32>
      tpu.vector_store %arg5[%c0_15, %c0_16], %22 {strides = array<i32>} : memref<2x128xf32, #tpu.memory_space<vmem>>, vector<2x128xf32>,
    } else {
    }
    %c0_10 = arith.constant 0 : index
    %c0_11 = arith.constant 0 : index
    %19 = vector.load %arg5[%c0_10, %c0_11] : memref<2x128xf32, #tpu.memory_space<vmem>>, vector<2x128xf32>
    %20 = arith.addf %19, %15 : vector<2x128xf32>
    %c0_12 = arith.constant 0 : index
    %c0_13 = arith.constant 0 : index
    %21 = vector.load %arg5[%c0_12, %c0_13] : memref<2x128xf32, #tpu.memory_space<vmem>>, vector<2x128xf32>
    tpu.vector_store %arg5[%c0_12, %c0_13], %20 {strides = array<i32>} : memref<2x128xf32, #tpu.memory_space<vmem>>, vector<2x128xf32>,
    return
  }
  func.func @transform_0(%arg0: i32) -> (i32, i32) {
    %c0_i32 = arith.constant 0 : i32
    %c0_i32_0 = arith.constant 0 : i32
    return %arg0, %c0_i32 : i32, i32
  }
  func.func @transform_1(%arg0: i32) -> (i32, i32) {
    %c0_i32 = arith.constant 0 : i32
    %c0_i32_0 = arith.constant 0 : i32
    %c0_i32_1 = arith.constant 0 : i32
    return %c0_i32, %c0_i32_0 : i32, i32
  }
  func.func @transform_2(%arg0: i32) -> (i32, i32) {
    %c0_i32 = arith.constant 0 : i32
    %c0_i32_0 = arith.constant 0 : i32
    %c0_i32_1 = arith.constant 0 : i32
    return %c0_i32, %c0_i32_0 : i32, i32
  }
  func.func @transform_3(%arg0: i32) -> (i32, i32) {
    %c0_i32 = arith.constant 0 : i32
    %c0_i32_0 = arith.constant 0 : i32
    return %arg0, %c0_i32 : i32, i32
  }
  func.func @transform_4(%arg0: i32) -> (i32, i32) {
    %c0_i32 = arith.constant 0 : i32
    %c0_i32_0 = arith.constant 0 : i32
    %c0_i32_1 = arith.constant 0 : i32
    return %c0_i32, %c0_i32_0 : i32, i32
  }
}

module attributes {stable_mosaic.version = 11 : i64} {
  func.func @_fused_layer_kernel(%arg0: i32, %arg1: memref<8x288xbf16, #tpu.memory_space<vmem>>, %arg2: memref<288x128xbf16, #tpu.memory_space<vmem>>, %arg3: memref<1x128xf32, #tpu.memory_space<vmem>>, %arg4: memref<1x288xf32, #tpu.memory_space<vmem>>, %arg5: memref<1x288xf32, #tpu.memory_space<vmem>>, %arg6: memref<8x128xbf16, #tpu.memory_space<vmem>>, %arg7: memref<2x128xf32, #tpu.memory_space<vmem>>) attributes {dimension_semantics = [#tpu.dimension_semantics<arbitrary>], iteration_bounds = array<i64: 1>, scalar_prefetch = 0 : i64, scratch_operands = 0 : i64, tpu.core_type = #tpu.core_type<tc>, window_params = [{transform_indices = @transform_0, window_bounds = array<i64: 8, 288>}, {pipeline_mode = #tpu.pipeline_mode<synchronous>, transform_indices = @transform_1, window_bounds = array<i64: 288, 128>}, {pipeline_mode = #tpu.pipeline_mode<synchronous>, transform_indices = @transform_2, window_bounds = array<i64: 1, 128>}, {pipeline_mode = #tpu.pipeline_mode<synchronous>, transform_indices = @transform_3, window_bounds = array<i64: 1, 288>}, {pipeline_mode = #tpu.pipeline_mode<synchronous>, transform_indices = @transform_4, window_bounds = array<i64: 1, 288>}, {transform_indices = @transform_5, window_bounds = array<i64: 8, 128>}, {pipeline_mode = #tpu.pipeline_mode<synchronous>, transform_indices = @transform_6, window_bounds = array<i64: 2, 128>}]} {
    %c0 = arith.constant 0 : index
    %c0_0 = arith.constant 0 : index
    %0 = vector.load %arg1[%c0, %c0_0] : memref<8x288xbf16, #tpu.memory_space<vmem>>, vector<8x288xbf16>
    %1 = arith.extf %0 : vector<8x288xbf16> to vector<8x288xf32>
    %c0_1 = arith.constant 0 : index
    %c0_2 = arith.constant 0 : index
    %2 = vector.load %arg4[%c0_1, %c0_2] : memref<1x288xf32, #tpu.memory_space<vmem>>, vector<1x288xf32>
    %3 = vector.broadcast %2 : vector<1x288xf32> to vector<8x288xf32>
    %4 = arith.mulf %1, %3 : vector<8x288xf32>
    %c0_3 = arith.constant 0 : index
    %c0_4 = arith.constant 0 : index
    %5 = vector.load %arg5[%c0_3, %c0_4] : memref<1x288xf32, #tpu.memory_space<vmem>>, vector<1x288xf32>
    %6 = vector.broadcast %5 : vector<1x288xf32> to vector<8x288xf32>
    %7 = arith.addf %4, %6 : vector<8x288xf32>
    %cst = arith.constant 0.00999999977 : f32
    %8 = vector.broadcast %cst : f32 to vector<8x288xf32>
    %9 = arith.mulf %8, %7 : vector<8x288xf32>
    %10 = arith.maximumf %7, %9 : vector<8x288xf32>
    %11 = arith.truncf %10 : vector<8x288xf32> to vector<8x288xbf16>
    %c0_5 = arith.constant 0 : index
    %c0_6 = arith.constant 0 : index
    %12 = vector.load %arg2[%c0_5, %c0_6] : memref<288x128xbf16, #tpu.memory_space<vmem>>, vector<288x128xbf16>
    %cst_7 = arith.constant dense<0.000000e+00> : vector<8x128xf32>
    %13 = tpu.matmul %11, %12, %cst_7 {dimension_numbers = #tpu.dot_dimension_numbers<[1], [0], [0], [1], [0, 0, 1, 1], [], []>} : vector<8x288xbf16>, vector<288x128xbf16>, vector<8x128xf32> -> vector<8x128xf32>
    %c0_8 = arith.constant 0 : index
    %c0_9 = arith.constant 0 : index
    %14 = vector.load %arg3[%c0_8, %c0_9] : memref<1x128xf32, #tpu.memory_space<vmem>>, vector<1x128xf32>
    %15 = vector.broadcast %14 : vector<1x128xf32> to vector<8x128xf32>
    %16 = arith.addf %13, %15 : vector<8x128xf32>
    %17 = arith.truncf %16 : vector<8x128xf32> to vector<8x128xbf16>
    %c0_10 = arith.constant 0 : index
    %c0_11 = arith.constant 0 : index
    %18 = vector.load %arg6[%c0_10, %c0_11] : memref<8x128xbf16, #tpu.memory_space<vmem>>, vector<8x128xbf16>
    tpu.vector_store %arg6[%c0_10, %c0_11], %17 {strides = array<i32>} : memref<8x128xbf16, #tpu.memory_space<vmem>>, vector<8x128xbf16>,
    %19 = arith.truncf %16 : vector<8x128xf32> to vector<8x128xbf16>
    %20 = arith.extf %19 : vector<8x128xbf16> to vector<8x128xf32>
    %cst_12 = arith.constant dense<0.000000e+00> : vector<128xf32>
    %21 = vector.multi_reduction <add>, %20, %cst_12 [0] : vector<8x128xf32> to vector<128xf32>
    %22 = vector.shape_cast %21 : vector<128xf32> to vector<1x128xf32>
    %23 = arith.mulf %20, %20 : vector<8x128xf32>
    %cst_13 = arith.constant dense<0.000000e+00> : vector<128xf32>
    %24 = vector.multi_reduction <add>, %23, %cst_13 [0] : vector<8x128xf32> to vector<128xf32>
    %25 = vector.shape_cast %24 : vector<128xf32> to vector<1x128xf32>
    %26 = tpu.concatenate %22, %25 in 0 : vector<1x128xf32>, vector<1x128xf32> -> vector<2x128xf32>
    %c0_i32 = arith.constant 0 : i32
    %27 = arith.cmpi eq, %arg0, %c0_i32 : i32
    %28 = arith.extui %27 : i1 to i32
    %c0_i32_14 = arith.constant 0 : i32
    %29 = arith.cmpi ne, %28, %c0_i32_14 : i32
    scf.if %29 {
      %cst_19 = arith.constant 0.000000e+00 : f32
      %33 = vector.broadcast %cst_19 : f32 to vector<2x128xf32>
      %c0_20 = arith.constant 0 : index
      %c0_21 = arith.constant 0 : index
      %34 = vector.load %arg7[%c0_20, %c0_21] : memref<2x128xf32, #tpu.memory_space<vmem>>, vector<2x128xf32>
      tpu.vector_store %arg7[%c0_20, %c0_21], %33 {strides = array<i32>} : memref<2x128xf32, #tpu.memory_space<vmem>>, vector<2x128xf32>,
    } else {
    }
    %c0_15 = arith.constant 0 : index
    %c0_16 = arith.constant 0 : index
    %30 = vector.load %arg7[%c0_15, %c0_16] : memref<2x128xf32, #tpu.memory_space<vmem>>, vector<2x128xf32>
    %31 = arith.addf %30, %26 : vector<2x128xf32>
    %c0_17 = arith.constant 0 : index
    %c0_18 = arith.constant 0 : index
    %32 = vector.load %arg7[%c0_17, %c0_18] : memref<2x128xf32, #tpu.memory_space<vmem>>, vector<2x128xf32>
    tpu.vector_store %arg7[%c0_17, %c0_18], %31 {strides = array<i32>} : memref<2x128xf32, #tpu.memory_space<vmem>>, vector<2x128xf32>,
    return
  }
  func.func @transform_0(%arg0: i32) -> (i32, i32) {
    %c0_i32 = arith.constant 0 : i32
    %c0_i32_0 = arith.constant 0 : i32
    return %arg0, %c0_i32 : i32, i32
  }
  func.func @transform_1(%arg0: i32) -> (i32, i32) {
    %c0_i32 = arith.constant 0 : i32
    %c0_i32_0 = arith.constant 0 : i32
    %c0_i32_1 = arith.constant 0 : i32
    return %c0_i32, %c0_i32_0 : i32, i32
  }
  func.func @transform_2(%arg0: i32) -> (i32, i32) {
    %c0_i32 = arith.constant 0 : i32
    %c0_i32_0 = arith.constant 0 : i32
    %c0_i32_1 = arith.constant 0 : i32
    return %c0_i32, %c0_i32_0 : i32, i32
  }
  func.func @transform_3(%arg0: i32) -> (i32, i32) {
    %c0_i32 = arith.constant 0 : i32
    %c0_i32_0 = arith.constant 0 : i32
    %c0_i32_1 = arith.constant 0 : i32
    return %c0_i32, %c0_i32_0 : i32, i32
  }
  func.func @transform_4(%arg0: i32) -> (i32, i32) {
    %c0_i32 = arith.constant 0 : i32
    %c0_i32_0 = arith.constant 0 : i32
    %c0_i32_1 = arith.constant 0 : i32
    return %c0_i32, %c0_i32_0 : i32, i32
  }
  func.func @transform_5(%arg0: i32) -> (i32, i32) {
    %c0_i32 = arith.constant 0 : i32
    %c0_i32_0 = arith.constant 0 : i32
    return %arg0, %c0_i32 : i32, i32
  }
  func.func @transform_6(%arg0: i32) -> (i32, i32) {
    %c0_i32 = arith.constant 0 : i32
    %c0_i32_0 = arith.constant 0 : i32
    %c0_i32_1 = arith.constant 0 : i32
    return %c0_i32, %c0_i32_0 : i32, i32
  }
}

module attributes {stable_mosaic.version = 11 : i64} {
  func.func @_fused_layer_kernel(%arg0: i32, %arg1: memref<2x256xbf16, #tpu.memory_space<vmem>>, %arg2: memref<256x128xbf16, #tpu.memory_space<vmem>>, %arg3: memref<1x128xf32, #tpu.memory_space<vmem>>, %arg4: memref<1x256xf32, #tpu.memory_space<vmem>>, %arg5: memref<1x256xf32, #tpu.memory_space<vmem>>, %arg6: memref<2x128xf32, #tpu.memory_space<vmem>>) attributes {dimension_semantics = [#tpu.dimension_semantics<parallel>], iteration_bounds = array<i64: 1>, scalar_prefetch = 0 : i64, scratch_operands = 0 : i64, tpu.core_type = #tpu.core_type<tc>, window_params = [{transform_indices = @transform_0, window_bounds = array<i64: 2, 256>}, {pipeline_mode = #tpu.pipeline_mode<synchronous>, transform_indices = @transform_1, window_bounds = array<i64: 256, 128>}, {pipeline_mode = #tpu.pipeline_mode<synchronous>, transform_indices = @transform_2, window_bounds = array<i64: 1, 128>}, {pipeline_mode = #tpu.pipeline_mode<synchronous>, transform_indices = @transform_3, window_bounds = array<i64: 1, 256>}, {pipeline_mode = #tpu.pipeline_mode<synchronous>, transform_indices = @transform_4, window_bounds = array<i64: 1, 256>}, {transform_indices = @transform_5, window_bounds = array<i64: 2, 128>}]} {
    %c0 = arith.constant 0 : index
    %c0_0 = arith.constant 0 : index
    %0 = vector.load %arg1[%c0, %c0_0] : memref<2x256xbf16, #tpu.memory_space<vmem>>, vector<2x256xbf16>
    %1 = arith.extf %0 : vector<2x256xbf16> to vector<2x256xf32>
    %c0_1 = arith.constant 0 : index
    %c0_2 = arith.constant 0 : index
    %2 = vector.load %arg4[%c0_1, %c0_2] : memref<1x256xf32, #tpu.memory_space<vmem>>, vector<1x256xf32>
    %3 = vector.broadcast %2 : vector<1x256xf32> to vector<2x256xf32>
    %4 = arith.mulf %1, %3 : vector<2x256xf32>
    %c0_3 = arith.constant 0 : index
    %c0_4 = arith.constant 0 : index
    %5 = vector.load %arg5[%c0_3, %c0_4] : memref<1x256xf32, #tpu.memory_space<vmem>>, vector<1x256xf32>
    %6 = vector.broadcast %5 : vector<1x256xf32> to vector<2x256xf32>
    %7 = arith.addf %4, %6 : vector<2x256xf32>
    %cst = arith.constant 0.00999999977 : f32
    %8 = vector.broadcast %cst : f32 to vector<2x256xf32>
    %9 = arith.mulf %8, %7 : vector<2x256xf32>
    %10 = arith.maximumf %7, %9 : vector<2x256xf32>
    %11 = arith.truncf %10 : vector<2x256xf32> to vector<2x256xbf16>
    %c0_5 = arith.constant 0 : index
    %c0_6 = arith.constant 0 : index
    %12 = vector.load %arg2[%c0_5, %c0_6] : memref<256x128xbf16, #tpu.memory_space<vmem>>, vector<256x128xbf16>
    %cst_7 = arith.constant dense<0.000000e+00> : vector<2x128xf32>
    %13 = tpu.matmul %11, %12, %cst_7 {dimension_numbers = #tpu.dot_dimension_numbers<[1], [0], [0], [1], [0, 0, 1, 1], [], []>} : vector<2x256xbf16>, vector<256x128xbf16>, vector<2x128xf32> -> vector<2x128xf32>
    %c0_8 = arith.constant 0 : index
    %c0_9 = arith.constant 0 : index
    %14 = vector.load %arg3[%c0_8, %c0_9] : memref<1x128xf32, #tpu.memory_space<vmem>>, vector<1x128xf32>
    %15 = vector.broadcast %14 : vector<1x128xf32> to vector<2x128xf32>
    %16 = arith.addf %13, %15 : vector<2x128xf32>
    %c0_10 = arith.constant 0 : index
    %c0_11 = arith.constant 0 : index
    %17 = vector.load %arg6[%c0_10, %c0_11] : memref<2x128xf32, #tpu.memory_space<vmem>>, vector<2x128xf32>
    tpu.vector_store %arg6[%c0_10, %c0_11], %16 {strides = array<i32>} : memref<2x128xf32, #tpu.memory_space<vmem>>, vector<2x128xf32>,
    return
  }
  func.func @transform_0(%arg0: i32) -> (i32, i32) {
    %c0_i32 = arith.constant 0 : i32
    %c0_i32_0 = arith.constant 0 : i32
    return %arg0, %c0_i32 : i32, i32
  }
  func.func @transform_1(%arg0: i32) -> (i32, i32) {
    %c0_i32 = arith.constant 0 : i32
    %c0_i32_0 = arith.constant 0 : i32
    %c0_i32_1 = arith.constant 0 : i32
    return %c0_i32, %c0_i32_0 : i32, i32
  }
  func.func @transform_2(%arg0: i32) -> (i32, i32) {
    %c0_i32 = arith.constant 0 : i32
    %c0_i32_0 = arith.constant 0 : i32
    %c0_i32_1 = arith.constant 0 : i32
    return %c0_i32, %c0_i32_0 : i32, i32
  }
  func.func @transform_3(%arg0: i32) -> (i32, i32) {
    %c0_i32 = arith.constant 0 : i32
    %c0_i32_0 = arith.constant 0 : i32
    %c0_i32_1 = arith.constant 0 : i32
    return %c0_i32, %c0_i32_0 : i32, i32
  }
  func.func @transform_4(%arg0: i32) -> (i32, i32) {
    %c0_i32 = arith.constant 0 : i32
    %c0_i32_0 = arith.constant 0 : i32
    %c0_i32_1 = arith.constant 0 : i32
    return %c0_i32, %c0_i32_0 : i32, i32
  }
  func.func @transform_5(%arg0: i32) -> (i32, i32) {
    %c0_i32 = arith.constant 0 : i32
    %c0_i32_0 = arith.constant 0 : i32
    return %arg0, %c0_i32 : i32, i32
  }
}

</mosaic_0001>

<llo_original>
// kernel: tile.27
$region0: #{tile.27}
  #allocation0 [shape = 's32[1]{0}', space=sflag, size = 0x4, scoped, tag = 'scoped memory for tile.27']
  %s0 = inlined_call_operand.vmem [shape: f32[32], index: 0, kind: input, shape index: {}]
  %s1 = inlined_call_operand.vmem [shape: f32[9,32], index: 1, kind: output, shape index: {}]
  // Predicated region
  $region2: #{tile.27} parent=0 // pred_check
    _
  $region3: #{tile.27} parent=0 // pred_check_branch
    %3 = sbr.rel (0) target = $region5
  $region4: #{tile.27} parent=0 // pred_region
    _
  $region5: #{tile.27} parent=0 // pred_fallthru
    _
  %v4 = vld [vmem:[%s0] ss:$0 sm:$0xff]
  %5 = vst [vmem:[%s1] sm:$0xff] %v4
  %s6 = scalar_lea.vmem %s1, 8
  %7 = vst [vmem:[%s6] sm:$0xff] %v4

// kernel: tile.29
$region0: #{tile.29}
  %s0 = inlined_call_operand.vmem [shape: f32[9,32], index: 0, kind: input, shape index: {}]
  %s1 = inlined_call_operand.vmem [shape: f32[1,288], index: 1, kind: output, shape index: {}]
  $region1: #{tile.29} parent=0
    #allocation0 [shape = 'u8[12288]{0}', space=vmem, size = 0x3000, scoped, tag = 'scoped mem for output reshape']
    %v2 = vld [vmem:[%s0] ss:$4 sm:$0x7]
    %vm3 = vcmask 261120
    %4 = vst.msk [vmem:[#allocation0] ss:$8 sm:$0x7] %vm3, %v2
    %s5 = scalar_lea.vmem %s0, 3
    %s6 = smov 3
    %v7 = vld [vmem:[%s5] ss:$4 sm:%s6]
    %8 = vrot.lane.b32.xlu0 %v7, 96
    %v9 = vpop.permute.xlu0 %8
    %vm10 = vcmask 1048320
    %11 = vst.msk [vmem:[#allocation0] ss:$8 sm:$0x3] %vm10, %v9
    %s12 = scalar_lea.vmem %s0, 2
    %s13 = smov 3
    %v14 = vld [vmem:[%s12] ss:$4 sm:%s13]
    %15 = vrot.lane.b32.xlu0 %v14, 64
    %v16 = vpop.permute.xlu0 %15
    %vm17 = vcmask 785920
    %18 = vst.msk [vmem:[#allocation0] ss:$8 sm:$0x3] %vm17, %v16
    %s19 = scalar_lea.vmem %s0, 1
    %s20 = smov 3
    %v21 = vld [vmem:[%s19] ss:$4 sm:%s20]
    %22 = vrot.lane.b32.xlu0 %v21, 32
    %v23 = vpop.permute.xlu0 %22
    %vm24 = vcmask 523520
    %25 = vst.msk [vmem:[#allocation0] ss:$8 sm:$0x3] %vm24, %v23
    %s27 = ssub.s32 2, 1
    %v28 = vld [vmem:[#allocation0] sm:%s27]
    %s30 = ssub.s32 2, 1
    %31 = vst [vmem:[%s1] sm:%s30] %v28
    %s32 = scalar_lea.vmem [#allocation0], 8
    %v33 = vld [vmem:[%s32] sm:%s27]
    %s35 = ssub.s32 2, 1
    %s36 = scalar_lea.vmem %s1, 1
    %37 = vst [vmem:[%s36] sm:%s35] %v33
    %s38 = scalar_lea.vmem [#allocation0], 16
    %v39 = vld [vmem:[%s38] sm:%s27]
    %s41 = ssub.s32 2, 1
    %s42 = scalar_lea.vmem %s1, 2
    %43 = vst [vmem:[%s42] sm:%s41] %v39

// kernel: discriminator_forward.4
$region0: #{discriminator_forward.4}
  #allocation0 [shape = 'u32[]', space=smem, size = 0x4, offset = 0x4, fixed_abs, tag = 'smem constant byte address 0x4 - core index']
  #allocation1 [shape = 'u32[72,128]{1,0:T(1,128)}', space=vmem, size = 0x9000, scoped, tag = 'internal scratch']
  %s0 = inlined_call_operand.vmem [shape: bf16[128,27], index: 0, kind: input, shape index: {}]
  %s1 = inlined_call_operand.vmem [shape: bf16[27,128], index: 1, kind: input, shape index: {}]
  %s2 = inlined_call_operand.vmem [shape: f32[1,128], index: 2, kind: input, shape index: {}]
  %s3 = inlined_call_operand.vmem [shape: bf16[128,128], index: 3, kind: output, shape index: {}]
  %s4 = sld [smem:[#allocation0]]
  $region45: #{discriminator_forward.4} parent=0
    _
  %s6 = ssub.s32 1, %s4
  %s7 = scalar_select 0, %s6, %s4
  loop: start=0, step=1, limit=4
  $region2: #{discriminator_forward.4} parent=0 // loop_pre_header
    _
  $region3: #{discriminator_forward.4} parent=0 // loop_header
    %s9 = sphi 0, %s13
    %p10 = scmp.ge.s32.totalorder %s9, 4
    %s19 = sphi 0, %s21
    %s22 = sphi 0, %s19
    %s23 = sphi 0, %s22
    %s39 = sphi 0, %s23
    %s43 = sphi 0, %s43
    %s45 = sphi 0, %s43
    %s46 = sphi 0, %s45
    %s60 = sphi 0, %s46
    %s64 = sphi 0, %s64
    %s66 = sphi 0, %s64
    %s67 = sphi 0, %s66
    %s81 = sphi 0, %s67
    %s87 = sphi 0, %s89
    %s90 = sphi 0, %s87
    %s91 = sphi 0, %s90
    %s107 = sphi 0, %s91
  $region4: #{discriminator_forward.4} parent=0 // loop_header_branch
    %12 = sbr.rel (%p10) target = $region8
  $region5: #{discriminator_forward.4} parent=0 // loop_body
    %s14 = ssub.s32 %s9, 1
    %s15 = ssub.s32 %s9, 2
    %s16 = sadd.s32 %s9, 1
    %s17 = ssub.s32 %s9, %s16
    %p18 = scmp.eq.s32.totalorder %s17, 0
    %s20 = sadd.s32 %s19, 1
    %s21 = scalar_select %p18, %s19, %s20
    %p24 = pneg %p18
    %p25 = scmp.eq.s32.totalorder %s9, 1
    %p26 = por %p24, %p25
    %p27 = scmp.ne.s32.totalorder %s19, %s22
    %p28 = scmp.eq.s32.totalorder %s9, 0
    %p29 = por %p27, %p28
    %p30 = scmp.ne.s32.totalorder %s19, %s22
    %p31 = scmp.eq.s32.totalorder %s14, 1
    %p32 = por %p30, %p31
    %p33 = scmp.ne.s32.totalorder %s22, %s23
    %p34 = scmp.eq.s32.totalorder %s14, 0
    %p35 = por %p33, %p34
    %p36 = scmp.ne.s32.totalorder %s22, %s23
    %p37 = scmp.eq.s32.totalorder %s15, 1
    %p38 = por %p36, %p37
    %p40 = scmp.ne.s32.totalorder %s23, %s39
    %p41 = scmp.eq.s32.totalorder %s15, 0
    %p42 = por %p40, %p41
    %s44 = sadd.s32 %s43, 1
    %p47 = scmp.eq.s32.totalorder %s9, 1
    %p48 = scmp.ne.s32.totalorder %s43, %s45
    %p49 = scmp.eq.s32.totalorder %s9, 0
    %p50 = por %p48, %p49
    %p51 = scmp.ne.s32.totalorder %s43, %s45
    %p52 = scmp.eq.s32.totalorder %s14, 1
    %p53 = por %p51, %p52
    %p54 = scmp.ne.s32.totalorder %s45, %s46
    %p55 = scmp.eq.s32.totalorder %s14, 0
    %p56 = por %p54, %p55
    %p57 = scmp.ne.s32.totalorder %s45, %s46
    %p58 = scmp.eq.s32.totalorder %s15, 1
    %p59 = por %p57, %p58
    %p61 = scmp.ne.s32.totalorder %s46, %s60
    %p62 = scmp.eq.s32.totalorder %s15, 0
    %p63 = por %p61, %p62
    %s65 = sadd.s32 %s64, 1
    %p68 = scmp.eq.s32.totalorder %s9, 1
    %p69 = scmp.ne.s32.totalorder %s64, %s66
    %p70 = scmp.eq.s32.totalorder %s9, 0
    %p71 = por %p69, %p70
    %p72 = scmp.ne.s32.totalorder %s64, %s66
    %p73 = scmp.eq.s32.totalorder %s14, 1
    %p74 = por %p72, %p73
    %p75 = scmp.ne.s32.totalorder %s66, %s67
    %p76 = scmp.eq.s32.totalorder %s14, 0
    %p77 = por %p75, %p76
    %p78 = scmp.ne.s32.totalorder %s66, %s67
    %p79 = scmp.eq.s32.totalorder %s15, 1
    %p80 = por %p78, %p79
    %p82 = scmp.ne.s32.totalorder %s67, %s81
    %p83 = scmp.eq.s32.totalorder %s15, 0
    %p84 = por %p82, %p83
    %s85 = ssub.s32 %s9, %s16
    %p86 = scmp.eq.s32.totalorder %s85, 0
    %s88 = sadd.s32 %s87, 1
    %s89 = scalar_select %p86, %s87, %s88
    %p92 = pneg %p86
    %p93 = scmp.eq.s32.totalorder %s9, 1
    %p94 = por %p92, %p93
    %p95 = scmp.ne.s32.totalorder %s87, %s90
    %p96 = scmp.eq.s32.totalorder %s9, 0
    %p97 = por %p95, %p96
    %p98 = scmp.ne.s32.totalorder %s87, %s90
    %p99 = scmp.eq.s32.totalorder %s14, 1
    %p100 = por %p98, %p99
    %p101 = scmp.ne.s32.totalorder %s90, %s91
    %p102 = scmp.eq.s32.totalorder %s14, 0
    %p103 = por %p101, %p102
    %p104 = scmp.ne.s32.totalorder %s90, %s91
    %p105 = scmp.eq.s32.totalorder %s15, 1
    %p106 = por %p104, %p105
    %p108 = scmp.ne.s32.totalorder %s91, %s107
    %p109 = scmp.eq.s32.totalorder %s15, 0
    %p110 = por %p108, %p109
    %p111 = scmp.le.s32.totalorder 1, %s9
    %p112 = scmp.lt.s32.totalorder %s9, 3
    %p113 = pnand %p111, %p112
    %p114 = pneg %p113
    // Predicated region
    $region9: #{discriminator_forward.4} parent=5 // pred_check
      _
    $region10: #{discriminator_forward.4} parent=5 // pred_check_branch
      %116 = sbr.rel (%p113) target = $region12
    $region11: #{discriminator_forward.4} parent=5 // pred_region
      %s117 = ssub.s32 %s9, 1
      // Predicated region
      $region13: #{discriminator_forward.4} parent=11 // pred_check
        %p118 = pneg %p56
      $region14: #{discriminator_forward.4} parent=11 // pred_check_branch
        %120 = sbr.rel (%p118) target = $region16
      $region15: #{discriminator_forward.4} parent=11 // pred_region
        _
      $region16: #{discriminator_forward.4} parent=11 // pred_fallthru
        _
      // Predicated region
      $region17: #{discriminator_forward.4} parent=11 // pred_check
        %p121 = pneg %p77
      $region18: #{discriminator_forward.4} parent=11 // pred_check_branch
        %123 = sbr.rel (%p121) target = $region20
      $region19: #{discriminator_forward.4} parent=11 // pred_region
        _
      $region20: #{discriminator_forward.4} parent=11 // pred_fallthru
        _
    $region12: #{discriminator_forward.4} parent=5 // pred_fallthru
      _
    %p124 = scmp.lt.s32.totalorder %s9, 2
    // Predicated region
    $region21: #{discriminator_forward.4} parent=5 // pred_check
      %p125 = pneg %p124
    $region22: #{discriminator_forward.4} parent=5 // pred_check_branch
      %127 = sbr.rel (%p125) target = $region24
    $region23: #{discriminator_forward.4} parent=5 // pred_region
      // Predicated region
      $region25: #{discriminator_forward.4} parent=23 // pred_check
        %p128 = pneg %p29
      $region26: #{discriminator_forward.4} parent=23 // pred_check_branch
        %130 = sbr.rel (%p128) target = $region28
      $region27: #{discriminator_forward.4} parent=23 // pred_region
        %s131 = smul.u32 8, %s9
        %p132 = scmp.lt.s32.totalorder %s131, 15
        %s133 = scalar_select %p132, %s131, 15
        %s134 = smul.addr %s133, 4
        %s135 = scalar_lea.vmem %s0, %s134
        %s136 = smul.u32 8, %s9
      $region28: #{discriminator_forward.4} parent=23 // pred_fallthru
        _
    $region24: #{discriminator_forward.4} parent=5 // pred_fallthru
      _
    %p137 = scmp.le.s32.totalorder 1, %s9
    %p138 = scmp.lt.s32.totalorder %s9, 3
    %p139 = pnand %p137, %p138
    %p140 = pneg %p139
    // Predicated region
    $region29: #{discriminator_forward.4} parent=5 // pred_check
      _
    $region30: #{discriminator_forward.4} parent=5 // pred_check_branch
      %142 = sbr.rel (%p139) target = $region32
    $region31: #{discriminator_forward.4} parent=5 // pred_region
      %s143 = ssub.s32 %s9, 1
      %s144 = smul.u32 8, %s14
      %p145 = scmp.lt.s32.totalorder %s144, 15
      %s146 = scalar_select %p145, %s144, 15
      %s147 = smul.addr %s146, 4
      %s148 = scalar_lea.vmem %s0, %s147
      %p149 = pneg %p35
      %p150 = pneg %p32
      %p151 = pneg %p56
      %p152 = pneg %p53
      %p153 = pneg %p77
      %p154 = pneg %p74
      %p155 = pneg %p103
      %p156 = pneg %p100
      %s157 = smul.u32 8, %s14
      %p158 = scmp.lt.s32.totalorder %s157, 15
      %s159 = scalar_select %p158, %s157, 15
      %s160 = smul.addr %s159, 4
      %s161 = scalar_lea.vmem %s3, %s160
      %s162 = smul.u32 8, %s14
      %p163 = scmp.lt.s32.totalorder %s162, 15
      %s164 = scalar_select %p163, %s162, 15
      %s165 = smul.addr %s164, 4
      %s166 = scalar_lea.vmem %s0, %s165
      %s167 = smul.u32 8, %s14
      %s168 = smul.u32 8, %s14
      %p169 = scmp.lt.s32.totalorder %s168, 15
      %s170 = scalar_select %p169, %s168, 15
      %s171 = smul.addr %s170, 4
      %s172 = scalar_lea.vmem %s3, %s171
      %s173 = smul.u32 8, %s14
      %v175 = vld [vmem:[%s166] sm:$0xf]
      %v176 = vld [vmem:[%s166 + $0x4] sm:$0xf]
      %v177 = vld [vmem:[%s166 + $0x8] sm:$0xf]
      %v178 = vld [vmem:[%s166 + $0xc] sm:$0xf]
      %v179 = vld [vmem:[%s166 + $0x10] sm:$0xf]
      %v180 = vld [vmem:[%s166 + $0x14] sm:$0xf]
      %v181 = vld [vmem:[%s166 + $0x18] sm:$0xf]
      %v182 = vld [vmem:[%s166 + $0x1c] sm:$0xf]
      %v183 = vld [vmem:[%s1] sm:$0xf]
      %v184 = vld [vmem:[%s1 + $0x4] sm:$0xf]
      %v185 = vld [vmem:[%s1 + $0x8] sm:$0xf]
      %v186 = vld [vmem:[%s1 + $0xc] sm:$0x3]
      %v187 = vld [vmem:[%s2] sm:$0x1]
      %v189 = vperm.slane %v187, 0
      %v199 = vunpack.c.l.b16 %v175
      %v200 = vunpack.c.l.b16 %v176
      %v201 = vunpack.c.l.b16 %v177
      %v202 = vunpack.c.l.b16 %v178
      %v203 = vunpack.c.l.b16 %v179
      %v204 = vunpack.c.l.b16 %v180
      %v205 = vunpack.c.l.b16 %v181
      %v206 = vunpack.c.l.b16 %v182
      %v207 = vpack.c.b16 %v200, %v199
      %v208 = vpack.c.b16 %v202, %v201
      %v209 = vpack.c.b16 %v204, %v203
      %v210 = vpack.c.b16 %v206, %v205
      %v215 = vunpack.c.l.b16 %v183
      %v216 = vunpack.c.l.b16 %v184
      %v217 = vunpack.c.l.b16 %v185
      %v218 = vunpack.c.l.b16 %v186
      %v219 = vpack.c.b16 %v216, %v215
      %v220 = vpack.c.b16 %v218, %v217
      %vm222 = vcmask 220160
      %v224 = vsel %vm222, %v207, 0
      %v227 = vsel %vm222, %v208, 0
      %v230 = vsel %vm222, %v209, 0
      %v233 = vsel %vm222, %v210, 0
      %vm235 = vcmask 1044480
      %vm236 = vcmask 1045504
      %v237 = vsel %vm235, 4294967295, 65535
      %v238 = vsel %vm236, %v237, 0
      %v240 = vand.u32 %v220, %v238
      %242 = vmatpush.bf16.msra.mxu0 0
      %243 = vmatpush.bf16.msra.mxu0 0
      %244 = vmatpush.bf16.msra.mxu0 0
      %245 = vmatpush.bf16.msra.mxu0 0
      %246 = vmatpush.bf16.msra.mxu0 0
      %247 = vmatpush.bf16.msra.mxu0 0
      %248 = vmatpush.bf16.msra.mxu0 %v240
      %249 = vmatpush.bf16.msra.mxu0 %v219
      %250 = vmatmul.bf16.gmra.mxu0 %v224
      %v251 = vpop.f32.mrf.mxu0
      %v252 = vadd.f32 %v189, %v251
      %v253 = vpop.f32.mrf.mxu0
      %v254 = vadd.f32 %v189, %v253
      %255 = vmatmul.bf16.gmra.mxu0 %v227
      %v256 = vpop.f32.mrf.mxu0
      %v257 = vadd.f32 %v189, %v256
      %v258 = vpop.f32.mrf.mxu0
      %v259 = vadd.f32 %v189, %v258
      %260 = vmatmul.bf16.gmra.mxu0 %v230
      %v261 = vpop.f32.mrf.mxu0
      %v262 = vadd.f32 %v189, %v261
      %v263 = vpop.f32.mrf.mxu0
      %v264 = vadd.f32 %v189, %v263
      %265 = vmatmul.bf16.gmra.mxu0 %v233
      %v266 = vpop.f32.mrf.mxu0
      %v267 = vadd.f32 %v189, %v266
      %v268 = vpop.f32.mrf.mxu0
      %v269 = vadd.f32 %v189, %v268
      %270 = vdwg.mxu0
      %v271 = vmul.f32 %v252, 0.01
      %v272 = vmul.f32 %v254, 0.01
      %v273 = vmul.f32 %v257, 0.01
      %v274 = vmul.f32 %v259, 0.01
      %v275 = vmul.f32 %v262, 0.01
      %v276 = vmul.f32 %v264, 0.01
      %v277 = vmul.f32 %v267, 0.01
      %v278 = vmul.f32 %v269, 0.01
      %v279 = vmax.f32 %v252, %v271
      %v280 = vmax.f32 %v254, %v272
      %v281 = vmax.f32 %v257, %v273
      %v282 = vmax.f32 %v259, %v274
      %v283 = vmax.f32 %v262, %v275
      %v284 = vmax.f32 %v264, %v276
      %v285 = vmax.f32 %v267, %v277
      %v286 = vmax.f32 %v269, %v278
      %v287 = vpack.c.bf16 %v279, %v279
      %v288 = vpack.c.bf16 %v280, %v280
      %v289 = vpack.c.bf16 %v281, %v281
      %v290 = vpack.c.bf16 %v282, %v282
      %v291 = vpack.c.bf16 %v283, %v283
      %v292 = vpack.c.bf16 %v284, %v284
      %v293 = vpack.c.bf16 %v285, %v285
      %v294 = vpack.c.bf16 %v286, %v286
      %295 = vst [vmem:[%s172] sm:$0xf] %v287
      %296 = vst [vmem:[%s172 + $0x4] sm:$0xf] %v288
      %297 = vst [vmem:[%s172 + $0x8] sm:$0xf] %v289
      %298 = vst [vmem:[%s172 + $0xc] sm:$0xf] %v290
      %299 = vst [vmem:[%s172 + $0x10] sm:$0xf] %v291
      %300 = vst [vmem:[%s172 + $0x14] sm:$0xf] %v292
      %301 = vst [vmem:[%s172 + $0x18] sm:$0xf] %v293
      %302 = vst [vmem:[%s172 + $0x1c] sm:$0xf] %v294
      %s303 = smul.u32 8, %s14
      %p304 = scmp.lt.s32.totalorder %s303, 15
      %s305 = scalar_select %p304, %s303, 15
      %s306 = smul.addr %s305, 4
      %s307 = scalar_lea.vmem %s3, %s306
      // Predicated region
      $region33: #{discriminator_forward.4} parent=31 // pred_check
        %p308 = pneg %p100
      $region34: #{discriminator_forward.4} parent=31 // pred_check_branch
        %310 = sbr.rel (%p308) target = $region36
      $region35: #{discriminator_forward.4} parent=31 // pred_region
        %s311 = smul.u32 8, %s14
      $region36: #{discriminator_forward.4} parent=31 // pred_fallthru
        _
    $region32: #{discriminator_forward.4} parent=5 // pred_fallthru
      _
    %p312 = scmp.le.s32.totalorder 2, %s9
    // Predicated region
    $region37: #{discriminator_forward.4} parent=5 // pred_check
      %p313 = pneg %p312
    $region38: #{discriminator_forward.4} parent=5 // pred_check_branch
      %315 = sbr.rel (%p313) target = $region40
    $region39: #{discriminator_forward.4} parent=5 // pred_region
      %s316 = ssub.s32 %s9, 2
      // Predicated region
      $region41: #{discriminator_forward.4} parent=39 // pred_check
        %p317 = pneg %p106
      $region42: #{discriminator_forward.4} parent=39 // pred_check_branch
        %319 = sbr.rel (%p317) target = $region44
      $region43: #{discriminator_forward.4} parent=39 // pred_region
        %s320 = smul.u32 8, %s15
        %p321 = scmp.lt.s32.totalorder %s320, 15
        %s322 = scalar_select %p321, %s320, 15
        %s323 = smul.addr %s322, 4
        %s324 = scalar_lea.vmem %s3, %s323
      $region44: #{discriminator_forward.4} parent=39 // pred_fallthru
        _
    $region40: #{discriminator_forward.4} parent=5 // pred_fallthru
      _
  $region6: #{discriminator_forward.4} parent=0 // loop_footer
    %s13 = sadd.s32 1, %s9
  $region7: #{discriminator_forward.4} parent=0 // loop_footer_branch
    %8 = sbr.rel target = $region3
  $region8: #{discriminator_forward.4} parent=0 // loop_exit
    _

// kernel: tile.37
$region0: #{tile.37}
  #allocation0 [shape = 's32[1]{0}', space=sflag, size = 0x4, scoped, tag = 'scoped memory for tile.37']
  %s0 = inlined_call_operand.vmem [shape: f32[64], index: 0, kind: input, shape index: {}]
  %s1 = inlined_call_operand.vmem [shape: f32[4,64], index: 1, kind: output, shape index: {}]
  // Predicated region
  $region2: #{tile.37} parent=0 // pred_check
    _
  $region3: #{tile.37} parent=0 // pred_check_branch
    %3 = sbr.rel (0) target = $region5
  $region4: #{tile.37} parent=0 // pred_region
    _
  $region5: #{tile.37} parent=0 // pred_fallthru
    _
  %v4 = vld [vmem:[%s0] ss:$0 sm:$0xff]
  %5 = vst [vmem:[%s1] sm:$0xf] %v4

// kernel: discriminator_forward.5
$region0: #{discriminator_forward.5}
  #allocation0 [shape = 'u32[]', space=smem, size = 0x4, offset = 0x4, fixed_abs, tag = 'smem constant byte address 0x4 - core index']
  #allocation1 [shape = 'u32[72,128]{1,0:T(1,128)}', space=vmem, size = 0x9000, scoped, tag = 'internal scratch']
  %s0 = inlined_call_operand.vmem [shape: bf16[32,144], index: 0, kind: input, shape index: {}]
  %s1 = inlined_call_operand.vmem [shape: bf16[144,128], index: 1, kind: input, shape index: {}]
  %s2 = inlined_call_operand.vmem [shape: f32[1,128], index: 2, kind: input, shape index: {}]
  %s3 = inlined_call_operand.vmem [shape: bf16[32,128], index: 3, kind: output, shape index: {0}]
  %s4 = inlined_call_operand.vmem [shape: f32[2,128], index: 4, kind: output, shape index: {1}]
  %5 = xla_tuple %s3, %s4
  %s6 = sld [smem:[#allocation0]]
  $region57: #{discriminator_forward.5} parent=0
    _
  %s8 = ssub.s32 1, %s6
  %s9 = scalar_select 0, %s8, %s6
  loop: start=0, step=1, limit=4
  $region2: #{discriminator_forward.5} parent=0 // loop_pre_header
    _
  $region3: #{discriminator_forward.5} parent=0 // loop_header
    %s11 = sphi 0, %s15
    %p12 = scmp.ge.s32.totalorder %s11, 4
    %s21 = sphi 0, %s23
    %s24 = sphi 0, %s21
    %s25 = sphi 0, %s24
    %s41 = sphi 0, %s25
    %s45 = sphi 0, %s45
    %s47 = sphi 0, %s45
    %s48 = sphi 0, %s47
    %s62 = sphi 0, %s48
    %s66 = sphi 0, %s66
    %s68 = sphi 0, %s66
    %s69 = sphi 0, %s68
    %s83 = sphi 0, %s69
    %s89 = sphi 0, %s91
    %s92 = sphi 0, %s89
    %s93 = sphi 0, %s92
    %s109 = sphi 0, %s93
    %s113 = sphi 0, %s113
    %s115 = sphi 0, %s113
    %s116 = sphi 0, %s115
    %s130 = sphi 0, %s116
  $region4: #{discriminator_forward.5} parent=0 // loop_header_branch
    %14 = sbr.rel (%p12) target = $region8
  $region5: #{discriminator_forward.5} parent=0 // loop_body
    %s16 = ssub.s32 %s11, 1
    %s17 = ssub.s32 %s11, 2
    %s18 = sadd.s32 %s11, 1
    %s19 = ssub.s32 %s11, %s18
    %p20 = scmp.eq.s32.totalorder %s19, 0
    %s22 = sadd.s32 %s21, 1
    %s23 = scalar_select %p20, %s21, %s22
    %p26 = pneg %p20
    %p27 = scmp.eq.s32.totalorder %s11, 1
    %p28 = por %p26, %p27
    %p29 = scmp.ne.s32.totalorder %s21, %s24
    %p30 = scmp.eq.s32.totalorder %s11, 0
    %p31 = por %p29, %p30
    %p32 = scmp.ne.s32.totalorder %s21, %s24
    %p33 = scmp.eq.s32.totalorder %s16, 1
    %p34 = por %p32, %p33
    %p35 = scmp.ne.s32.totalorder %s24, %s25
    %p36 = scmp.eq.s32.totalorder %s16, 0
    %p37 = por %p35, %p36
    %p38 = scmp.ne.s32.totalorder %s24, %s25
    %p39 = scmp.eq.s32.totalorder %s17, 1
    %p40 = por %p38, %p39
    %p42 = scmp.ne.s32.totalorder %s25, %s41
    %p43 = scmp.eq.s32.totalorder %s17, 0
    %p44 = por %p42, %p43
    %s46 = sadd.s32 %s45, 1
    %p49 = scmp.eq.s32.totalorder %s11, 1
    %p50 = scmp.ne.s32.totalorder %s45, %s47
    %p51 = scmp.eq.s32.totalorder %s11, 0
    %p52 = por %p50, %p51
    %p53 = scmp.ne.s32.totalorder %s45, %s47
    %p54 = scmp.eq.s32.totalorder %s16, 1
    %p55 = por %p53, %p54
    %p56 = scmp.ne.s32.totalorder %s47, %s48
    %p57 = scmp.eq.s32.totalorder %s16, 0
    %p58 = por %p56, %p57
    %p59 = scmp.ne.s32.totalorder %s47, %s48
    %p60 = scmp.eq.s32.totalorder %s17, 1
    %p61 = por %p59, %p60
    %p63 = scmp.ne.s32.totalorder %s48, %s62
    %p64 = scmp.eq.s32.totalorder %s17, 0
    %p65 = por %p63, %p64
    %s67 = sadd.s32 %s66, 1
    %p70 = scmp.eq.s32.totalorder %s11, 1
    %p71 = scmp.ne.s32.totalorder %s66, %s68
    %p72 = scmp.eq.s32.totalorder %s11, 0
    %p73 = por %p71, %p72
    %p74 = scmp.ne.s32.totalorder %s66, %s68
    %p75 = scmp.eq.s32.totalorder %s16, 1
    %p76 = por %p74, %p75
    %p77 = scmp.ne.s32.totalorder %s68, %s69
    %p78 = scmp.eq.s32.totalorder %s16, 0
    %p79 = por %p77, %p78
    %p80 = scmp.ne.s32.totalorder %s68, %s69
    %p81 = scmp.eq.s32.totalorder %s17, 1
    %p82 = por %p80, %p81
    %p84 = scmp.ne.s32.totalorder %s69, %s83
    %p85 = scmp.eq.s32.totalorder %s17, 0
    %p86 = por %p84, %p85
    %s87 = ssub.s32 %s11, %s18
    %p88 = scmp.eq.s32.totalorder %s87, 0
    %s90 = sadd.s32 %s89, 1
    %s91 = scalar_select %p88, %s89, %s90
    %p94 = pneg %p88
    %p95 = scmp.eq.s32.totalorder %s11, 1
    %p96 = por %p94, %p95
    %p97 = scmp.ne.s32.totalorder %s89, %s92
    %p98 = scmp.eq.s32.totalorder %s11, 0
    %p99 = por %p97, %p98
    %p100 = scmp.ne.s32.totalorder %s89, %s92
    %p101 = scmp.eq.s32.totalorder %s16, 1
    %p102 = por %p100, %p101
    %p103 = scmp.ne.s32.totalorder %s92, %s93
    %p104 = scmp.eq.s32.totalorder %s16, 0
    %p105 = por %p103, %p104
    %p106 = scmp.ne.s32.totalorder %s92, %s93
    %p107 = scmp.eq.s32.totalorder %s17, 1
    %p108 = por %p106, %p107
    %p110 = scmp.ne.s32.totalorder %s93, %s109
    %p111 = scmp.eq.s32.totalorder %s17, 0
    %p112 = por %p110, %p111
    %s114 = sadd.s32 %s113, 1
    %p117 = scmp.eq.s32.totalorder %s11, 1
    %p118 = scmp.ne.s32.totalorder %s113, %s115
    %p119 = scmp.eq.s32.totalorder %s11, 0
    %p120 = por %p118, %p119
    %p121 = scmp.ne.s32.totalorder %s113, %s115
    %p122 = scmp.eq.s32.totalorder %s16, 1
    %p123 = por %p121, %p122
    %p124 = scmp.ne.s32.totalorder %s115, %s116
    %p125 = scmp.eq.s32.totalorder %s16, 0
    %p126 = por %p124, %p125
    %p127 = scmp.ne.s32.totalorder %s115, %s116
    %p128 = scmp.eq.s32.totalorder %s17, 1
    %p129 = por %p127, %p128
    %p131 = scmp.ne.s32.totalorder %s116, %s130
    %p132 = scmp.eq.s32.totalorder %s17, 0
    %p133 = por %p131, %p132
    %p134 = scmp.le.s32.totalorder 1, %s11
    %p135 = scmp.lt.s32.totalorder %s11, 3
    %p136 = pnand %p134, %p135
    %p137 = pneg %p136
    // Predicated region
    $region9: #{discriminator_forward.5} parent=5 // pred_check
      _
    $region10: #{discriminator_forward.5} parent=5 // pred_check_branch
      %139 = sbr.rel (%p136) target = $region12
    $region11: #{discriminator_forward.5} parent=5 // pred_region
      %s140 = ssub.s32 %s11, 1
      // Predicated region
      $region13: #{discriminator_forward.5} parent=11 // pred_check
        %p141 = pneg %p58
      $region14: #{discriminator_forward.5} parent=11 // pred_check_branch
        %143 = sbr.rel (%p141) target = $region16
      $region15: #{discriminator_forward.5} parent=11 // pred_region
        _
      $region16: #{discriminator_forward.5} parent=11 // pred_fallthru
        _
      // Predicated region
      $region17: #{discriminator_forward.5} parent=11 // pred_check
        %p144 = pneg %p79
      $region18: #{discriminator_forward.5} parent=11 // pred_check_branch
        %146 = sbr.rel (%p144) target = $region20
      $region19: #{discriminator_forward.5} parent=11 // pred_region
        _
      $region20: #{discriminator_forward.5} parent=11 // pred_fallthru
        _
    $region12: #{discriminator_forward.5} parent=5 // pred_fallthru
      _
    %p147 = scmp.lt.s32.totalorder %s11, 2
    // Predicated region
    $region21: #{discriminator_forward.5} parent=5 // pred_check
      %p148 = pneg %p147
    $region22: #{discriminator_forward.5} parent=5 // pred_check_branch
      %150 = sbr.rel (%p148) target = $region24
    $region23: #{discriminator_forward.5} parent=5 // pred_region
      // Predicated region
      $region25: #{discriminator_forward.5} parent=23 // pred_check
        %p151 = pneg %p31
      $region26: #{discriminator_forward.5} parent=23 // pred_check_branch
        %153 = sbr.rel (%p151) target = $region28
      $region27: #{discriminator_forward.5} parent=23 // pred_region
        %s154 = smul.u32 2, %s11
        %p155 = scmp.lt.s32.totalorder %s154, 3
        %s156 = scalar_select %p155, %s154, 3
        %s157 = smul.addr %s156, 2
        %s158 = smul.addr %s157, 4
        %s159 = scalar_lea.vmem %s0, %s158
        %s160 = smul.u32 2, %s11
      $region28: #{discriminator_forward.5} parent=23 // pred_fallthru
        _
    $region24: #{discriminator_forward.5} parent=5 // pred_fallthru
      _
    %p161 = scmp.le.s32.totalorder 1, %s11
    %p162 = scmp.lt.s32.totalorder %s11, 3
    %p163 = pnand %p161, %p162
    %p164 = pneg %p163
    // Predicated region
    $region29: #{discriminator_forward.5} parent=5 // pred_check
      _
    $region30: #{discriminator_forward.5} parent=5 // pred_check_branch
      %166 = sbr.rel (%p163) target = $region32
    $region31: #{discriminator_forward.5} parent=5 // pred_region
      %s167 = ssub.s32 %s11, 1
      %s168 = smul.u32 2, %s16
      %p169 = scmp.lt.s32.totalorder %s168, 3
      %s170 = scalar_select %p169, %s168, 3
      %s171 = smul.addr %s170, 2
      %s172 = smul.addr %s171, 4
      %s173 = scalar_lea.vmem %s0, %s172
      %p174 = pneg %p37
      %p175 = pneg %p34
      %p176 = pneg %p58
      %p177 = pneg %p55
      %p178 = pneg %p79
      %p179 = pneg %p76
      %p180 = pneg %p105
      %p181 = pneg %p102
      %s182 = smul.u32 2, %s16
      %p183 = scmp.lt.s32.totalorder %s182, 3
      %s184 = scalar_select %p183, %s182, 3
      %s185 = smul.addr %s184, 4
      %s186 = scalar_lea.vmem %s3, %s185
      %p187 = pneg %p126
      %p188 = pneg %p123
      %s189 = smul.u32 2, %s16
      %p190 = scmp.lt.s32.totalorder %s189, 3
      %s191 = scalar_select %p190, %s189, 3
      %s192 = smul.addr %s191, 2
      %s193 = smul.addr %s192, 4
      %s194 = scalar_lea.vmem %s0, %s193
      %s195 = smul.u32 2, %s16
      %s196 = smul.u32 2, %s16
      %p197 = scmp.lt.s32.totalorder %s196, 3
      %s198 = scalar_select %p197, %s196, 3
      %s199 = smul.addr %s198, 4
      %s200 = scalar_lea.vmem %s3, %s199
      %s201 = smul.u32 2, %s16
      %v203 = vld [vmem:[%s194] sm:$0xff]
      %v204 = vld [vmem:[%s194 + $0x8] sm:$0xff]
      %v205 = vld [vmem:[%s1] sm:$0xf]
      %v206 = vld [vmem:[%s1 + $0x4] sm:$0xf]
      %v207 = vld [vmem:[%s1 + $0x8] sm:$0xf]
      %v208 = vld [vmem:[%s1 + $0xc] sm:$0xf]
      %v209 = vld [vmem:[%s1 + $0x10] sm:$0xf]
      %v210 = vld [vmem:[%s1 + $0x14] sm:$0xf]
      %v211 = vld [vmem:[%s1 + $0x18] sm:$0xf]
      %v212 = vld [vmem:[%s1 + $0x1c] sm:$0xf]
      %v213 = vld [vmem:[%s1 + $0x20] sm:$0xf]
      %v214 = vld [vmem:[%s1 + $0x24] sm:$0xf]
      %v215 = vld [vmem:[%s1 + $0x28] sm:$0xf]
      %v216 = vld [vmem:[%s1 + $0x2c] sm:$0xf]
      %v217 = vld [vmem:[%s1 + $0x30] sm:$0xf]
      %v218 = vld [vmem:[%s1 + $0x34] sm:$0xf]
      %v219 = vld [vmem:[%s1 + $0x38] sm:$0xf]
      %v220 = vld [vmem:[%s1 + $0x3c] sm:$0xf]
      %v221 = vld [vmem:[%s1 + $0x40] sm:$0xf]
      %v222 = vld [vmem:[%s1 + $0x44] sm:$0xf]
      %v223 = vld [vmem:[%s2] sm:$0x1]
      %v225 = vperm.slane %v223, 0
      %v229 = vunpack.c.l.b16 %v203
      %v230 = vunpack.c.h.b16 %v203
      %v231 = vunpack.c.l.b16 %v204
      %v232 = vunpack.c.h.b16 %v204
      %v233 = vpack.c.b16 %v231, %v229
      %v234 = vpack.c.b16 %v232, %v230
      %v254 = vunpack.c.l.b16 %v205
      %v255 = vunpack.c.l.b16 %v206
      %v256 = vunpack.c.l.b16 %v207
      %v257 = vunpack.c.l.b16 %v208
      %v258 = vunpack.c.l.b16 %v209
      %v259 = vunpack.c.l.b16 %v210
      %v260 = vunpack.c.l.b16 %v211
      %v261 = vunpack.c.l.b16 %v212
      %v262 = vunpack.c.l.b16 %v213
      %v263 = vunpack.c.l.b16 %v214
      %v264 = vunpack.c.l.b16 %v215
      %v265 = vunpack.c.l.b16 %v216
      %v266 = vunpack.c.l.b16 %v217
      %v267 = vunpack.c.l.b16 %v218
      %v268 = vunpack.c.l.b16 %v219
      %v269 = vunpack.c.l.b16 %v220
      %v270 = vunpack.c.l.b16 %v221
      %v271 = vunpack.c.l.b16 %v222
      %v272 = vpack.c.b16 %v255, %v254
      %v273 = vpack.c.b16 %v257, %v256
      %v274 = vpack.c.b16 %v259, %v258
      %v275 = vpack.c.b16 %v261, %v260
      %v276 = vpack.c.b16 %v263, %v262
      %v277 = vpack.c.b16 %v265, %v264
      %v278 = vpack.c.b16 %v267, %v266
      %v279 = vpack.c.b16 %v269, %v268
      %v280 = vpack.c.b16 %v271, %v270
      %vm290 = vcmask 130048
      %v292 = vsel %vm290, %v234, 0
      %294 = vmatpush.bf16.msra.mxu0 %v279
      %295 = vmatpush.bf16.msra.mxu0 %v278
      %296 = vmatpush.bf16.msra.mxu0 %v277
      %297 = vmatpush.bf16.msra.mxu0 %v276
      %298 = vmatpush.bf16.msra.mxu0 %v275
      %299 = vmatpush.bf16.msra.mxu0 %v274
      %300 = vmatpush.bf16.msra.mxu0 %v273
      %301 = vmatpush.bf16.msra.mxu0 %v272
      %302 = vmatmul.bf16.gmra.mxu0 %v233
      %v303 = vpop.f32.mrf.mxu0
      %v304 = vadd.f32 %v225, %v303
      %v305 = vpop.f32.mrf.mxu0
      %v306 = vadd.f32 %v225, %v305
      %307 = vdwg.mxu0
      %308 = vmatpush.bf16.msra.mxu0 0
      %309 = vmatpush.bf16.msra.mxu0 0
      %310 = vmatpush.bf16.msra.mxu0 0
      %311 = vmatpush.bf16.msra.mxu0 0
      %312 = vmatpush.bf16.msra.mxu0 0
      %313 = vmatpush.bf16.msra.mxu0 0
      %314 = vmatpush.bf16.msra.mxu0 0
      %315 = vmatpush.bf16.msra.mxu0 %v280
      %316 = vmatmul.bf16.gmra.mxu0 %v292
      %v317 = vpop.f32.mrf.mxu0
      %v318 = vadd.f32 %v304, %v317
      %v319 = vpop.f32.mrf.mxu0
      %v320 = vadd.f32 %v306, %v319
      %321 = vdwg.mxu0
      %v322 = vpack.c.bf16 %v318, %v318
      %v323 = vpack.c.bf16 %v320, %v320
      %324 = vst [vmem:[%s200] sm:$0xf] %v322
      %325 = vst [vmem:[%s200 + $0x4] sm:$0xf] %v323
      %v326 = vunpack.c.l.bf16 %v322
      %v327 = vunpack.c.l.bf16 %v323
      %v328 = vadd.f32 %v326, %v327
      %v329 = vrot.slane %v328, 4
      %v330 = vadd.f32 %v328, %v329
      %v331 = vrot.slane %v330, 2
      %v332 = vadd.f32 %v330, %v331
      %v333 = vrot.slane %v332, 1
      %v334 = vadd.f32 %v332, %v333
      %v335 = vmul.f32 %v326, %v326
      %v336 = vmul.f32 %v327, %v327
      %v337 = vadd.f32 %v335, %v336
      %v338 = vrot.slane %v337, 4
      %v339 = vadd.f32 %v337, %v338
      %v340 = vrot.slane %v339, 2
      %v341 = vadd.f32 %v339, %v340
      %v342 = vrot.slane %v341, 1
      %v343 = vadd.f32 %v341, %v342
      %vm344 = vcmask 1040384
      %v345 = vsel %vm344, %v334, %v343
      %p346 = scmp.eq.s32.totalorder %s16, 0
      // Predicated region
      $region33: #{discriminator_forward.5} parent=31 // pred_check
        %p347 = pneg %p346
      $region34: #{discriminator_forward.5} parent=31 // pred_check_branch
        %349 = sbr.rel (%p347) target = $region36
      $region35: #{discriminator_forward.5} parent=31 // pred_region
        %350 = vst [vmem:[%s4] sm:$0x3] 0.0
      $region36: #{discriminator_forward.5} parent=31 // pred_fallthru
        _
      %v351 = vld [vmem:[%s4] sm:$0x3]
      %v352 = vadd.f32 %v351, %v345
      %353 = vst [vmem:[%s4] sm:$0x3] %v352
      %s354 = smul.u32 2, %s16
      %p355 = scmp.lt.s32.totalorder %s354, 3
      %s356 = scalar_select %p355, %s354, 3
      %s357 = smul.addr %s356, 4
      %s358 = scalar_lea.vmem %s3, %s357
      // Predicated region
      $region37: #{discriminator_forward.5} parent=31 // pred_check
        %p359 = pneg %p102
      $region38: #{discriminator_forward.5} parent=31 // pred_check_branch
        %361 = sbr.rel (%p359) target = $region40
      $region39: #{discriminator_forward.5} parent=31 // pred_region
        %s362 = smul.u32 2, %s16
      $region40: #{discriminator_forward.5} parent=31 // pred_fallthru
        _
      // Predicated region
      $region41: #{discriminator_forward.5} parent=31 // pred_check
        %p363 = pneg %p123
      $region42: #{discriminator_forward.5} parent=31 // pred_check_branch
        %365 = sbr.rel (%p363) target = $region44
      $region43: #{discriminator_forward.5} parent=31 // pred_region
        _
      $region44: #{discriminator_forward.5} parent=31 // pred_fallthru
        _
      // Predicated region
      $region45: #{discriminator_forward.5} parent=31 // pred_check
        %p366 = pneg %p123
      $region46: #{discriminator_forward.5} parent=31 // pred_check_branch
        %368 = sbr.rel (%p366) target = $region48
      $region47: #{discriminator_forward.5} parent=31 // pred_region
        _
      $region48: #{discriminator_forward.5} parent=31 // pred_fallthru
        _
    $region32: #{discriminator_forward.5} parent=5 // pred_fallthru
      _
    %p369 = scmp.le.s32.totalorder 2, %s11
    // Predicated region
    $region49: #{discriminator_forward.5} parent=5 // pred_check
      %p370 = pneg %p369
    $region50: #{discriminator_forward.5} parent=5 // pred_check_branch
      %372 = sbr.rel (%p370) target = $region52
    $region51: #{discriminator_forward.5} parent=5 // pred_region
      %s373 = ssub.s32 %s11, 2
      // Predicated region
      $region53: #{discriminator_forward.5} parent=51 // pred_check
        %p374 = pneg %p108
      $region54: #{discriminator_forward.5} parent=51 // pred_check_branch
        %376 = sbr.rel (%p374) target = $region56
      $region55: #{discriminator_forward.5} parent=51 // pred_region
        %s377 = smul.u32 2, %s17
        %p378 = scmp.lt.s32.totalorder %s377, 3
        %s379 = scalar_select %p378, %s377, 3
        %s380 = smul.addr %s379, 4
        %s381 = scalar_lea.vmem %s3, %s380
      $region56: #{discriminator_forward.5} parent=51 // pred_fallthru
        _
    $region52: #{discriminator_forward.5} parent=5 // pred_fallthru
      _
  $region6: #{discriminator_forward.5} parent=0 // loop_footer
    %s15 = sadd.s32 1, %s11
  $region7: #{discriminator_forward.5} parent=0 // loop_footer_branch
    %10 = sbr.rel target = $region3
  $region8: #{discriminator_forward.5} parent=0 // loop_exit
    _

// kernel: tile.39
$region0: #{tile.39}
  %s0 = inlined_call_operand.vmem [shape: f32[4,64], index: 0, kind: input, shape index: {}]
  %s1 = inlined_call_operand.vmem [shape: f32[1,256], index: 1, kind: output, shape index: {}]
  $region1: #{tile.39} parent=0
    #allocation0 [shape = 'u8[8192]{0}', space=vmem, size = 0x2000, scoped, tag = 'scoped mem for output reshape']
    #allocation1 [shape = 'u8[4096]{0}', space=vmem, size = 0x1000, scoped, tag = 'scoped mem for input reshape']
    %s3 = ssub.s32 16, 1
    %v4 = vld [vmem:[%s0] sm:%s3]
    %5 = vst [vmem:[#allocation1] sm:%s3] %v4
    %s6 = smov 3
    %v7 = vld [vmem:[#allocation1] ss:$2 sm:%s6]
    %vm8 = vcmask 523264
    %9 = vst.msk [vmem:[#allocation0] ss:$8 sm:$0x3] %vm8, %v7
    %s10 = scalar_lea.vmem [#allocation1], 1
    %s11 = smov 3
    %v12 = vld [vmem:[%s10] ss:$2 sm:%s11]
    %13 = vrot.lane.b32.xlu0 %v12, 64
    %v14 = vpop.permute.xlu0 %13
    %vm15 = vcmask 1048064
    %16 = vst.msk [vmem:[#allocation0] ss:$8 sm:$0x3] %vm15, %v14
    %s18 = ssub.s32 2, 1
    %v19 = vld [vmem:[#allocation0] sm:%s18]
    %s21 = ssub.s32 2, 1
    %22 = vst [vmem:[%s1] sm:%s21] %v19
    %s23 = scalar_lea.vmem [#allocation0], 8
    %v24 = vld [vmem:[%s23] sm:%s18]
    %s26 = ssub.s32 2, 1
    %s27 = scalar_lea.vmem %s1, 1
    %28 = vst [vmem:[%s27] sm:%s26] %v24

// kernel: discriminator_forward.6
$region0: #{discriminator_forward.6}
  #allocation0 [shape = 'u32[]', space=smem, size = 0x4, offset = 0x4, fixed_abs, tag = 'smem constant byte address 0x4 - core index']
  #allocation1 [shape = 'u32[72,128]{1,0:T(1,128)}', space=vmem, size = 0x9000, scoped, tag = 'internal scratch']
  %s0 = inlined_call_operand.vmem [shape: bf16[8,288], index: 0, kind: input, shape index: {}]
  %s1 = inlined_call_operand.vmem [shape: bf16[288,128], index: 1, kind: input, shape index: {}]
  %s2 = inlined_call_operand.vmem [shape: f32[1,128], index: 2, kind: input, shape index: {}]
  %s3 = inlined_call_operand.vmem [shape: f32[1,288], index: 3, kind: input, shape index: {}]
  %s4 = inlined_call_operand.vmem [shape: f32[1,288], index: 4, kind: input, shape index: {}]
  %s5 = inlined_call_operand.vmem [shape: bf16[8,128], index: 5, kind: output, shape index: {0}]
  %s6 = inlined_call_operand.vmem [shape: f32[2,128], index: 6, kind: output, shape index: {1}]
  %7 = xla_tuple %s5, %s6
  %s8 = sld [smem:[#allocation0]]
  $region42: #{discriminator_forward.6} parent=0
    _
  %s10 = ssub.s32 1, %s8
  %s11 = scalar_select 0, %s10, %s8
  // Predicated region
  $region2: #{discriminator_forward.6} parent=0 // pred_check
    _
  $region3: #{discriminator_forward.6} parent=0 // pred_check_branch
    %13 = sbr.rel (0) target = $region5
  $region4: #{discriminator_forward.6} parent=0 // pred_region
    _
  $region5: #{discriminator_forward.6} parent=0 // pred_fallthru
    _
  // Predicated region
  $region6: #{discriminator_forward.6} parent=0 // pred_check
    _
  $region7: #{discriminator_forward.6} parent=0 // pred_check_branch
    %15 = sbr.rel (0) target = $region9
  $region8: #{discriminator_forward.6} parent=0 // pred_region
    _
  $region9: #{discriminator_forward.6} parent=0 // pred_fallthru
    _
  // Predicated region
  $region10: #{discriminator_forward.6} parent=0 // pred_check
    _
  $region11: #{discriminator_forward.6} parent=0 // pred_check_branch
    %17 = sbr.rel (0) target = $region13
  $region12: #{discriminator_forward.6} parent=0 // pred_region
    _
  $region13: #{discriminator_forward.6} parent=0 // pred_fallthru
    _
  // Predicated region
  $region14: #{discriminator_forward.6} parent=0 // pred_check
    _
  $region15: #{discriminator_forward.6} parent=0 // pred_check_branch
    %19 = sbr.rel (0) target = $region17
  $region16: #{discriminator_forward.6} parent=0 // pred_region
    _
  $region17: #{discriminator_forward.6} parent=0 // pred_fallthru
    _
  // Predicated region
  $region18: #{discriminator_forward.6} parent=0 // pred_check
    _
  $region19: #{discriminator_forward.6} parent=0 // pred_check_branch
    %21 = sbr.rel (0) target = $region21
  $region20: #{discriminator_forward.6} parent=0 // pred_region
    _
  $region21: #{discriminator_forward.6} parent=0 // pred_fallthru
    _
  %v23 = vld [vmem:[%s0] sm:$0xff]
  %v24 = vld [vmem:[%s0 + $0x8] sm:$0xf]
  %v25 = vunpack.c.l.bf16 %v23
  %v26 = vunpack.c.h.bf16 %v23
  %v27 = vunpack.c.l.bf16 %v24
  %v28 = vld [vmem:[%s3] sm:$0x7]
  %v30 = vperm.slane %v28, 0
  %v31 = vperm.slane %v28, 1
  %v32 = vperm.slane %v28, 2
  %v36 = vmul.f32 %v25, %v30
  %v37 = vmul.f32 %v26, %v31
  %v38 = vmul.f32 %v27, %v32
  %v39 = vld [vmem:[%s4] sm:$0x7]
  %v41 = vperm.slane %v39, 0
  %v42 = vperm.slane %v39, 1
  %v43 = vperm.slane %v39, 2
  %v47 = vadd.f32 %v36, %v41
  %v48 = vadd.f32 %v37, %v42
  %v49 = vadd.f32 %v38, %v43
  %v50 = vmul.f32 %v47, 0.01
  %v51 = vmul.f32 %v48, 0.01
  %v52 = vmul.f32 %v49, 0.01
  %v53 = vmax.f32 %v47, %v50
  %v54 = vmax.f32 %v48, %v51
  %v55 = vmax.f32 %v49, %v52
  %v56 = vpack.c.bf16 %v53, %v53
  %v57 = vpack.c.bf16 %v54, %v54
  %v58 = vpack.c.bf16 %v55, %v55
  %v59 = vld [vmem:[%s1] sm:$0xf]
  %v60 = vld [vmem:[%s1 + $0x4] sm:$0xf]
  %v61 = vld [vmem:[%s1 + $0x8] sm:$0xf]
  %v62 = vld [vmem:[%s1 + $0xc] sm:$0xf]
  %v63 = vld [vmem:[%s1 + $0x10] sm:$0xf]
  %v64 = vld [vmem:[%s1 + $0x14] sm:$0xf]
  %v65 = vld [vmem:[%s1 + $0x18] sm:$0xf]
  %v66 = vld [vmem:[%s1 + $0x1c] sm:$0xf]
  %v67 = vld [vmem:[%s1 + $0x20] sm:$0xf]
  %v68 = vld [vmem:[%s1 + $0x24] sm:$0xf]
  %v69 = vld [vmem:[%s1 + $0x28] sm:$0xf]
  %v70 = vld [vmem:[%s1 + $0x2c] sm:$0xf]
  %v71 = vld [vmem:[%s1 + $0x30] sm:$0xf]
  %v72 = vld [vmem:[%s1 + $0x34] sm:$0xf]
  %v73 = vld [vmem:[%s1 + $0x38] sm:$0xf]
  %v74 = vld [vmem:[%s1 + $0x3c] sm:$0xf]
  %v75 = vld [vmem:[%s1 + $0x40] sm:$0xf]
  %v76 = vld [vmem:[%s1 + $0x44] sm:$0xf]
  %v77 = vld [vmem:[%s1 + $0x48] sm:$0xf]
  %v78 = vld [vmem:[%s1 + $0x4c] sm:$0xf]
  %v79 = vld [vmem:[%s1 + $0x50] sm:$0xf]
  %v80 = vld [vmem:[%s1 + $0x54] sm:$0xf]
  %v81 = vld [vmem:[%s1 + $0x58] sm:$0xf]
  %v82 = vld [vmem:[%s1 + $0x5c] sm:$0xf]
  %v83 = vld [vmem:[%s1 + $0x60] sm:$0xf]
  %v84 = vld [vmem:[%s1 + $0x64] sm:$0xf]
  %v85 = vld [vmem:[%s1 + $0x68] sm:$0xf]
  %v86 = vld [vmem:[%s1 + $0x6c] sm:$0xf]
  %v87 = vld [vmem:[%s1 + $0x70] sm:$0xf]
  %v88 = vld [vmem:[%s1 + $0x74] sm:$0xf]
  %v89 = vld [vmem:[%s1 + $0x78] sm:$0xf]
  %v90 = vld [vmem:[%s1 + $0x7c] sm:$0xf]
  %v91 = vld [vmem:[%s1 + $0x80] sm:$0xf]
  %v92 = vld [vmem:[%s1 + $0x84] sm:$0xf]
  %v93 = vld [vmem:[%s1 + $0x88] sm:$0xf]
  %v94 = vld [vmem:[%s1 + $0x8c] sm:$0xf]
  %v95 = vld [vmem:[%s2] sm:$0x1]
  %v97 = vperm.slane %v95, 0
  %v135 = vunpack.c.l.b16 %v59
  %v136 = vunpack.c.l.b16 %v60
  %v137 = vunpack.c.l.b16 %v61
  %v138 = vunpack.c.l.b16 %v62
  %v139 = vunpack.c.l.b16 %v63
  %v140 = vunpack.c.l.b16 %v64
  %v141 = vunpack.c.l.b16 %v65
  %v142 = vunpack.c.l.b16 %v66
  %v143 = vunpack.c.l.b16 %v67
  %v144 = vunpack.c.l.b16 %v68
  %v145 = vunpack.c.l.b16 %v69
  %v146 = vunpack.c.l.b16 %v70
  %v147 = vunpack.c.l.b16 %v71
  %v148 = vunpack.c.l.b16 %v72
  %v149 = vunpack.c.l.b16 %v73
  %v150 = vunpack.c.l.b16 %v74
  %v151 = vunpack.c.l.b16 %v75
  %v152 = vunpack.c.l.b16 %v76
  %v153 = vunpack.c.l.b16 %v77
  %v154 = vunpack.c.l.b16 %v78
  %v155 = vunpack.c.l.b16 %v79
  %v156 = vunpack.c.l.b16 %v80
  %v157 = vunpack.c.l.b16 %v81
  %v158 = vunpack.c.l.b16 %v82
  %v159 = vunpack.c.l.b16 %v83
  %v160 = vunpack.c.l.b16 %v84
  %v161 = vunpack.c.l.b16 %v85
  %v162 = vunpack.c.l.b16 %v86
  %v163 = vunpack.c.l.b16 %v87
  %v164 = vunpack.c.l.b16 %v88
  %v165 = vunpack.c.l.b16 %v89
  %v166 = vunpack.c.l.b16 %v90
  %v167 = vunpack.c.l.b16 %v91
  %v168 = vunpack.c.l.b16 %v92
  %v169 = vunpack.c.l.b16 %v93
  %v170 = vunpack.c.l.b16 %v94
  %v171 = vpack.c.b16 %v136, %v135
  %v172 = vpack.c.b16 %v138, %v137
  %v173 = vpack.c.b16 %v140, %v139
  %v174 = vpack.c.b16 %v142, %v141
  %v175 = vpack.c.b16 %v144, %v143
  %v176 = vpack.c.b16 %v146, %v145
  %v177 = vpack.c.b16 %v148, %v147
  %v178 = vpack.c.b16 %v150, %v149
  %v179 = vpack.c.b16 %v152, %v151
  %v180 = vpack.c.b16 %v154, %v153
  %v181 = vpack.c.b16 %v156, %v155
  %v182 = vpack.c.b16 %v158, %v157
  %v183 = vpack.c.b16 %v160, %v159
  %v184 = vpack.c.b16 %v162, %v161
  %v185 = vpack.c.b16 %v164, %v163
  %v186 = vpack.c.b16 %v166, %v165
  %v187 = vpack.c.b16 %v168, %v167
  %v188 = vpack.c.b16 %v170, %v169
  %vm207 = vcmask 261120
  %v209 = vsel %vm207, %v58, 0
  %211 = vmatpush.bf16.msra.mxu0 %v178
  %212 = vmatpush.bf16.msra.mxu0 %v177
  %213 = vmatpush.bf16.msra.mxu0 %v176
  %214 = vmatpush.bf16.msra.mxu0 %v175
  %215 = vmatpush.bf16.msra.mxu0 %v174
  %216 = vmatpush.bf16.msra.mxu0 %v173
  %217 = vmatpush.bf16.msra.mxu0 %v172
  %218 = vmatpush.bf16.msra.mxu0 %v171
  %219 = vmatmul.bf16.gmra.mxu0 %v56
  %v220 = vpop.f32.mrf.mxu0
  %v221 = vadd.f32 %v97, %v220
  %v222 = vpop.f32.mrf.mxu0
  %223 = vdwg.mxu0
  %224 = vmatpush.bf16.msra.mxu0 %v186
  %225 = vmatpush.bf16.msra.mxu0 %v185
  %226 = vmatpush.bf16.msra.mxu0 %v184
  %227 = vmatpush.bf16.msra.mxu0 %v183
  %228 = vmatpush.bf16.msra.mxu0 %v182
  %229 = vmatpush.bf16.msra.mxu0 %v181
  %230 = vmatpush.bf16.msra.mxu0 %v180
  %231 = vmatpush.bf16.msra.mxu0 %v179
  %232 = vmatmul.bf16.gmra.mxu0 %v57
  %v233 = vpop.f32.mrf.mxu0
  %v234 = vadd.f32 %v221, %v233
  %v235 = vpop.f32.mrf.mxu0
  %236 = vdwg.mxu0
  %237 = vmatpush.bf16.msra.mxu0 0
  %238 = vmatpush.bf16.msra.mxu0 0
  %239 = vmatpush.bf16.msra.mxu0 0
  %240 = vmatpush.bf16.msra.mxu0 0
  %241 = vmatpush.bf16.msra.mxu0 0
  %242 = vmatpush.bf16.msra.mxu0 0
  %243 = vmatpush.bf16.msra.mxu0 %v188
  %244 = vmatpush.bf16.msra.mxu0 %v187
  %245 = vmatmul.bf16.gmra.mxu0 %v209
  %v246 = vpop.f32.mrf.mxu0
  %v247 = vadd.f32 %v234, %v246
  %v248 = vpop.f32.mrf.mxu0
  %249 = vdwg.mxu0
  %v250 = vpack.c.bf16 %v247, %v247
  %251 = vst [vmem:[%s5] sm:$0xf] %v250
  %v252 = vunpack.c.l.bf16 %v250
  %v253 = vrot.slane %v252, 4
  %v254 = vadd.f32 %v252, %v253
  %v255 = vrot.slane %v254, 2
  %v256 = vadd.f32 %v254, %v255
  %v257 = vrot.slane %v256, 1
  %v258 = vadd.f32 %v256, %v257
  %v259 = vmul.f32 %v252, %v252
  %v260 = vrot.slane %v259, 4
  %v261 = vadd.f32 %v259, %v260
  %v262 = vrot.slane %v261, 2
  %v263 = vadd.f32 %v261, %v262
  %v264 = vrot.slane %v263, 1
  %v265 = vadd.f32 %v263, %v264
  %vm266 = vcmask 1040384
  %v267 = vsel %vm266, %v258, %v265
  %p268 = scmp.eq.s32.totalorder 0, 0
  // Predicated region
  $region22: #{discriminator_forward.6} parent=0 // pred_check
    %p269 = pneg %p268
  $region23: #{discriminator_forward.6} parent=0 // pred_check_branch
    %271 = sbr.rel (%p269) target = $region25
  $region24: #{discriminator_forward.6} parent=0 // pred_region
    %272 = vst [vmem:[%s6] sm:$0x3] 0.0
  $region25: #{discriminator_forward.6} parent=0 // pred_fallthru
    _
  %v273 = vld [vmem:[%s6] sm:$0x3]
  %v274 = vadd.f32 %v273, %v267
  %275 = vst [vmem:[%s6] sm:$0x3] %v274
  // Predicated region
  $region26: #{discriminator_forward.6} parent=0 // pred_check
    _
  $region27: #{discriminator_forward.6} parent=0 // pred_check_branch
    %277 = sbr.rel (0) target = $region29
  $region28: #{discriminator_forward.6} parent=0 // pred_region
    _
  $region29: #{discriminator_forward.6} parent=0 // pred_fallthru
    _
  // Predicated region
  $region30: #{discriminator_forward.6} parent=0 // pred_check
    _
  $region31: #{discriminator_forward.6} parent=0 // pred_check_branch
    %279 = sbr.rel (0) target = $region33
  $region32: #{discriminator_forward.6} parent=0 // pred_region
    _
  $region33: #{discriminator_forward.6} parent=0 // pred_fallthru
    _
  // Predicated region
  $region34: #{discriminator_forward.6} parent=0 // pred_check
    _
  $region35: #{discriminator_forward.6} parent=0 // pred_check_branch
    %281 = sbr.rel (0) target = $region37
  $region36: #{discriminator_forward.6} parent=0 // pred_region
    _
  $region37: #{discriminator_forward.6} parent=0 // pred_fallthru
    _
  // Predicated region
  $region38: #{discriminator_forward.6} parent=0 // pred_check
    _
  $region39: #{discriminator_forward.6} parent=0 // pred_check_branch
    %283 = sbr.rel (0) target = $region41
  $region40: #{discriminator_forward.6} parent=0 // pred_region
    _
  $region41: #{discriminator_forward.6} parent=0 // pred_fallthru
    _

// kernel: discriminator_forward.7
$region0: #{discriminator_forward.7}
  #allocation0 [shape = 'u32[]', space=smem, size = 0x4, offset = 0x4, fixed_abs, tag = 'smem constant byte address 0x4 - core index']
  #allocation1 [shape = 'u32[72,128]{1,0:T(1,128)}', space=vmem, size = 0x9000, scoped, tag = 'internal scratch']
  %s0 = inlined_call_operand.vmem [shape: bf16[2,256], index: 0, kind: input, shape index: {}]
  %s1 = inlined_call_operand.vmem [shape: bf16[256,128], index: 1, kind: input, shape index: {}]
  %s2 = inlined_call_operand.vmem [shape: f32[1,128], index: 2, kind: input, shape index: {}]
  %s3 = inlined_call_operand.vmem [shape: f32[1,256], index: 3, kind: input, shape index: {}]
  %s4 = inlined_call_operand.vmem [shape: f32[1,256], index: 4, kind: input, shape index: {}]
  %s5 = inlined_call_operand.vmem [shape: f32[2,128], index: 5, kind: output, shape index: {}]
  %s6 = sld [smem:[#allocation0]]
  $region30: #{discriminator_forward.7} parent=0
    _
  %s8 = ssub.s32 1, %s6
  %s9 = scalar_select 0, %s8, %s6
  // Predicated region
  $region2: #{discriminator_forward.7} parent=0 // pred_check
    _
  $region3: #{discriminator_forward.7} parent=0 // pred_check_branch
    %11 = sbr.rel (0) target = $region5
  $region4: #{discriminator_forward.7} parent=0 // pred_region
    _
  $region5: #{discriminator_forward.7} parent=0 // pred_fallthru
    _
  // Predicated region
  $region6: #{discriminator_forward.7} parent=0 // pred_check
    _
  $region7: #{discriminator_forward.7} parent=0 // pred_check_branch
    %13 = sbr.rel (0) target = $region9
  $region8: #{discriminator_forward.7} parent=0 // pred_region
    _
  $region9: #{discriminator_forward.7} parent=0 // pred_fallthru
    _
  // Predicated region
  $region10: #{discriminator_forward.7} parent=0 // pred_check
    _
  $region11: #{discriminator_forward.7} parent=0 // pred_check_branch
    %15 = sbr.rel (0) target = $region13
  $region12: #{discriminator_forward.7} parent=0 // pred_region
    _
  $region13: #{discriminator_forward.7} parent=0 // pred_fallthru
    _
  // Predicated region
  $region14: #{discriminator_forward.7} parent=0 // pred_check
    _
  $region15: #{discriminator_forward.7} parent=0 // pred_check_branch
    %17 = sbr.rel (0) target = $region17
  $region16: #{discriminator_forward.7} parent=0 // pred_region
    _
  $region17: #{discriminator_forward.7} parent=0 // pred_fallthru
    _
  // Predicated region
  $region18: #{discriminator_forward.7} parent=0 // pred_check
    _
  $region19: #{discriminator_forward.7} parent=0 // pred_check_branch
    %19 = sbr.rel (0) target = $region21
  $region20: #{discriminator_forward.7} parent=0 // pred_region
    _
  $region21: #{discriminator_forward.7} parent=0 // pred_fallthru
    _
  %v20 = vld [vmem:[%s0] sm:$0x3]
  %v21 = vunpack.c.l.bf16 %v20
  %v22 = vld [vmem:[%s3] sm:$0x3]
  %v24 = vperm.slane %v22, 0
  %v25 = vperm.slane %v22, 1
  %v26 = vrot.slane %v25, 6
  %vm27 = vcmask 1041408
  %v28 = vsel %vm27, %v24, %v26
  %v30 = vmul.f32 %v21, %v28
  %v31 = vld [vmem:[%s4] sm:$0x3]
  %v33 = vperm.slane %v31, 0
  %v34 = vperm.slane %v31, 1
  %v35 = vrot.slane %v34, 6
  %v36 = vsel %vm27, %v33, %v35
  %v38 = vadd.f32 %v30, %v36
  %v39 = vmul.f32 %v38, 0.01
  %v40 = vmax.f32 %v38, %v39
  %42 = vst [vmem:[#allocation1] ss:$4 sm:$0xff] %v40
  %v43 = vld.sshfl [vmem:[#allocation1] sm:$0xff pattern:$0x73625140]
  %v44 = vld.sshfl [vmem:[#allocation1 + $0x8] sm:$0xff pattern:$0x73625140]
  %v47 = vpack.c.bf16 %v43, %v43
  %v48 = vpack.c.bf16 %v44, %v44
  %v49 = vld [vmem:[%s1] sm:$0xf]
  %v50 = vld [vmem:[%s1 + $0x4] sm:$0xf]
  %v51 = vld [vmem:[%s1 + $0x8] sm:$0xf]
  %v52 = vld [vmem:[%s1 + $0xc] sm:$0xf]
  %v53 = vld [vmem:[%s1 + $0x10] sm:$0xf]
  %v54 = vld [vmem:[%s1 + $0x14] sm:$0xf]
  %v55 = vld [vmem:[%s1 + $0x18] sm:$0xf]
  %v56 = vld [vmem:[%s1 + $0x1c] sm:$0xf]
  %v57 = vld [vmem:[%s1 + $0x20] sm:$0xf]
  %v58 = vld [vmem:[%s1 + $0x24] sm:$0xf]
  %v59 = vld [vmem:[%s1 + $0x28] sm:$0xf]
  %v60 = vld [vmem:[%s1 + $0x2c] sm:$0xf]
  %v61 = vld [vmem:[%s1 + $0x30] sm:$0xf]
  %v62 = vld [vmem:[%s1 + $0x34] sm:$0xf]
  %v63 = vld [vmem:[%s1 + $0x38] sm:$0xf]
  %v64 = vld [vmem:[%s1 + $0x3c] sm:$0xf]
  %v65 = vld [vmem:[%s1 + $0x40] sm:$0xf]
  %v66 = vld [vmem:[%s1 + $0x44] sm:$0xf]
  %v67 = vld [vmem:[%s1 + $0x48] sm:$0xf]
  %v68 = vld [vmem:[%s1 + $0x4c] sm:$0xf]
  %v69 = vld [vmem:[%s1 + $0x50] sm:$0xf]
  %v70 = vld [vmem:[%s1 + $0x54] sm:$0xf]
  %v71 = vld [vmem:[%s1 + $0x58] sm:$0xf]
  %v72 = vld [vmem:[%s1 + $0x5c] sm:$0xf]
  %v73 = vld [vmem:[%s1 + $0x60] sm:$0xf]
  %v74 = vld [vmem:[%s1 + $0x64] sm:$0xf]
  %v75 = vld [vmem:[%s1 + $0x68] sm:$0xf]
  %v76 = vld [vmem:[%s1 + $0x6c] sm:$0xf]
  %v77 = vld [vmem:[%s1 + $0x70] sm:$0xf]
  %v78 = vld [vmem:[%s1 + $0x74] sm:$0xf]
  %v79 = vld [vmem:[%s1 + $0x78] sm:$0xf]
  %v80 = vld [vmem:[%s1 + $0x7c] sm:$0xf]
  %v81 = vld [vmem:[%s2] sm:$0x1]
  %v83 = vperm.slane %v81, 0
  %v117 = vunpack.c.l.b16 %v49
  %v118 = vunpack.c.l.b16 %v50
  %v119 = vunpack.c.l.b16 %v51
  %v120 = vunpack.c.l.b16 %v52
  %v121 = vunpack.c.l.b16 %v53
  %v122 = vunpack.c.l.b16 %v54
  %v123 = vunpack.c.l.b16 %v55
  %v124 = vunpack.c.l.b16 %v56
  %v125 = vunpack.c.l.b16 %v57
  %v126 = vunpack.c.l.b16 %v58
  %v127 = vunpack.c.l.b16 %v59
  %v128 = vunpack.c.l.b16 %v60
  %v129 = vunpack.c.l.b16 %v61
  %v130 = vunpack.c.l.b16 %v62
  %v131 = vunpack.c.l.b16 %v63
  %v132 = vunpack.c.l.b16 %v64
  %v133 = vunpack.c.l.b16 %v65
  %v134 = vunpack.c.l.b16 %v66
  %v135 = vunpack.c.l.b16 %v67
  %v136 = vunpack.c.l.b16 %v68
  %v137 = vunpack.c.l.b16 %v69
  %v138 = vunpack.c.l.b16 %v70
  %v139 = vunpack.c.l.b16 %v71
  %v140 = vunpack.c.l.b16 %v72
  %v141 = vunpack.c.l.b16 %v73
  %v142 = vunpack.c.l.b16 %v74
  %v143 = vunpack.c.l.b16 %v75
  %v144 = vunpack.c.l.b16 %v76
  %v145 = vunpack.c.l.b16 %v77
  %v146 = vunpack.c.l.b16 %v78
  %v147 = vunpack.c.l.b16 %v79
  %v148 = vunpack.c.l.b16 %v80
  %v149 = vpack.c.b16 %v118, %v117
  %v150 = vpack.c.b16 %v120, %v119
  %v151 = vpack.c.b16 %v122, %v121
  %v152 = vpack.c.b16 %v124, %v123
  %v153 = vpack.c.b16 %v126, %v125
  %v154 = vpack.c.b16 %v128, %v127
  %v155 = vpack.c.b16 %v130, %v129
  %v156 = vpack.c.b16 %v132, %v131
  %v157 = vpack.c.b16 %v134, %v133
  %v158 = vpack.c.b16 %v136, %v135
  %v159 = vpack.c.b16 %v138, %v137
  %v160 = vpack.c.b16 %v140, %v139
  %v161 = vpack.c.b16 %v142, %v141
  %v162 = vpack.c.b16 %v144, %v143
  %v163 = vpack.c.b16 %v146, %v145
  %v164 = vpack.c.b16 %v148, %v147
  %181 = vmatpush.bf16.msra.mxu0 %v156
  %182 = vmatpush.bf16.msra.mxu0 %v155
  %183 = vmatpush.bf16.msra.mxu0 %v154
  %184 = vmatpush.bf16.msra.mxu0 %v153
  %185 = vmatpush.bf16.msra.mxu0 %v152
  %186 = vmatpush.bf16.msra.mxu0 %v151
  %187 = vmatpush.bf16.msra.mxu0 %v150
  %188 = vmatpush.bf16.msra.mxu0 %v149
  %189 = vmatmul.bf16.gmra.mxu0 %v47
  %v190 = vpop.f32.mrf.mxu0
  %v191 = vadd.f32 %v83, %v190
  %v192 = vpop.f32.mrf.mxu0
  %193 = vdwg.mxu0
  %194 = vmatpush.bf16.msra.mxu0 %v164
  %195 = vmatpush.bf16.msra.mxu0 %v163
  %196 = vmatpush.bf16.msra.mxu0 %v162
  %197 = vmatpush.bf16.msra.mxu0 %v161
  %198 = vmatpush.bf16.msra.mxu0 %v160
  %199 = vmatpush.bf16.msra.mxu0 %v159
  %200 = vmatpush.bf16.msra.mxu0 %v158
  %201 = vmatpush.bf16.msra.mxu0 %v157
  %202 = vmatmul.bf16.gmra.mxu0 %v48
  %v203 = vpop.f32.mrf.mxu0
  %v204 = vadd.f32 %v191, %v203
  %v205 = vpop.f32.mrf.mxu0
  %206 = vdwg.mxu0
  %207 = vst [vmem:[%s5] sm:$0x3] %v204
  // Predicated region
  $region22: #{discriminator_forward.7} parent=0 // pred_check
    _
  $region23: #{discriminator_forward.7} parent=0 // pred_check_branch
    %209 = sbr.rel (0) target = $region25
  $region24: #{discriminator_forward.7} parent=0 // pred_region
    _
  $region25: #{discriminator_forward.7} parent=0 // pred_fallthru
    _
  // Predicated region
  $region26: #{discriminator_forward.7} parent=0 // pred_check
    _
  $region27: #{discriminator_forward.7} parent=0 // pred_check_branch
    %211 = sbr.rel (0) target = $region29
  $region28: #{discriminator_forward.7} parent=0 // pred_region
    _
  $region29: #{discriminator_forward.7} parent=0 // pred_fallthru
    _

</llo_original>
